<compile_context>
chip_gen: v7x
topology: tpu7x:2x2x1
jax: 0.10.0
libtpu: 0.0.40
codegen_flags: <defaults>
</compile_context>

<pallas_src>
import jax
import jax.numpy as jnp
from jax import lax
from jax.experimental import pallas as pl
from jax.experimental.pallas import tpu as pltpu


def _round_up(x, m):
    return ((x + m - 1) // m) * m


def _make_conv_kernel(kh_count, kw_count):
    """relu(sum_taps x_tap @ w_tap + bias) for one (Cout tile, image, output row)."""

    def kernel(*refs):
        x_refs = refs[:kh_count]               # kh_count refs, each (KW, WOPP, CINP) bf16
        w_ref, b_ref, o_ref = refs[kh_count:]  # (KH*KW, CINP, TN) bf16, (1, TN) f32, (WOPP, TN) f32
        acc = None
        for kh in range(kh_count):
            for kw in range(kw_count):
                t = kh * kw_count + kw
                c = jnp.dot(x_refs[kh][kw], w_ref[t],
                            preferred_element_type=jnp.float32)
                acc = c if acc is None else acc + c
        o_ref[...] = jnp.maximum(acc + b_ref[...], 0.0).astype(o_ref.dtype)

    return kernel


def aspp_module_forward(x_nchw, weight_oihw, bn_gamma, bn_beta, bn_mean, bn_var,
                        *, padding, dilation, eps=1e-5, data_format="NCHW"):
    """Forward of _ASPPModule: dilated conv (stride 1, no bias) -> BN (eval) -> ReLU."""
    N, Cin, H, W = x_nchw.shape
    Cout, _, KH, KW = weight_oihw.shape
    p, d = padding, dilation

    # Output spatial size (PyTorch stride-1 conv formula).
    Ho = H + 2 * p - d * (KH - 1)
    Wo = W + 2 * p - d * (KW - 1)

    WOPP = _round_up(Wo, 16)           # row-tile width (lane-dense for bf16/f32)
    CINP = _round_up(Cin, 128)         # contraction dim (lanes of A / sublanes of B)
    NP = _round_up(Cout, 128)
    if NP <= 256:
        TN = NP
    elif NP % 256 == 0:
        TN = 256
    else:
        TN = 128
    nco = NP // TN
    KHW = KH * KW

    # ---- Wrapper-side layout glue: one fused pad + cast pass (bf16). ----
    x_nhwc = jnp.transpose(x_nchw, (0, 2, 3, 1))
    x_pad = jnp.pad(
        x_nhwc,
        ((0, 0), (p, p), (p, p + (WOPP - Wo)), (0, CINP - Cin)),
    ).astype(jnp.bfloat16)
    # Partial (KW-only) pre-shift: (N, Hp, KW, WOPP, CINP).  The KH shift is
    # handled inside the kernel by the BlockSpec index_map (row i + kh*d).
    xs = jnp.stack([x_pad[:, :, kw * d: kw * d + WOPP, :] for kw in range(KW)],
                   axis=2)

    # Fold BN (eval form) scale into the conv weights; keep only a f32 bias.
    scale = (bn_gamma / jnp.sqrt(bn_var + eps)).astype(jnp.float32)
    bias = (bn_beta - bn_mean * scale).astype(jnp.float32)
    w_mat = jnp.transpose(weight_oihw, (2, 3, 1, 0)).reshape(KHW, Cin, Cout)
    w_mat = (w_mat * scale[None, None, :]).astype(jnp.float32)
    w_mat = jnp.pad(w_mat, ((0, 0), (0, CINP - Cin), (0, NP - Cout))).astype(jnp.bfloat16)
    b_mat = jnp.pad(bias.reshape(1, Cout), ((0, 0), (0, NP - Cout)))

    # ---- BlockSpecs / grid. ----
    x_specs = [
        pl.BlockSpec((None, None, KW, WOPP, CINP),
                     lambda j, n, i, kh=kh: (n, i + kh * d, 0, 0, 0))
        for kh in range(KH)
    ]
    w_spec = pl.BlockSpec((KHW, CINP, TN), lambda j, n, i: (0, 0, j))
    b_spec = pl.BlockSpec((1, TN), lambda j, n, i: (0, j))
    out_spec = pl.BlockSpec((None, None, WOPP, TN), lambda j, n, i: (n, i, 0, j))

    # VMEM budget: KH double-buffered bf16 row blocks + resident bf16 weight
    # panel (x2 buffers) + f32 output tile.
    est = (KH * (KW * WOPP * CINP * 2) * 2 +
           KHW * CINP * TN * 2 * 2 +
           WOPP * TN * 4 * 2 + TN * 4 * 2)
    vmem_limit = int(min(96 * 1024 * 1024, max(32 * 1024 * 1024, 2 * est)))

    out = pl.pallas_call(
        _make_conv_kernel(KH, KW),
        out_shape=jax.ShapeDtypeStruct((N, Ho, WOPP, NP), jnp.float32),
        grid=(nco, N, Ho),
        in_specs=x_specs + [w_spec, b_spec],
        out_specs=out_spec,
        compiler_params=pltpu.CompilerParams(
            dimension_semantics=("parallel", "parallel", "parallel"),
            vmem_limit_bytes=vmem_limit,
        ),
    )(*([xs] * KH), w_mat, b_mat)

    out = out[:, :, :Wo, :Cout].astype(x_nchw.dtype)
    if data_format == "NCHW":
        # TODO(synk): consumers that accept channels-last should pass
        # data_format="NHWC" and skip this full-output HBM relayout.
        out = jnp.transpose(out, (0, 3, 1, 2))
    return out


# ----------------------------- references ----------------------------------

def _reference_f32(x, w, gamma, beta, mean, var, *, padding, dilation, eps=1e-5):
    y = lax.conv_general_dilated(
        x, w, window_strides=(1, 1),
        padding=((padding, padding), (padding, padding)),
        rhs_dilation=(dilation, dilation),
        dimension_numbers=("NCHW", "OIHW", "NCHW"))
    scale = gamma / jnp.sqrt(var + eps)
    bias = beta - mean * scale
    return jnp.maximum(y * scale[None, :, None, None] + bias[None, :, None, None], 0.0)


def _reference_bf16_inputs(x, w, gamma, beta, mean, var, *, padding, dilation, eps=1e-5):
    """Same math as the kernel (bf16 operands, f32 accumulation, folded BN)."""
    scale = gamma / jnp.sqrt(var + eps)
    bias = beta - mean * scale
    wf = (w * scale[:, None, None, None]).astype(jnp.bfloat16).astype(jnp.float32)
    xb = x.astype(jnp.bfloat16).astype(jnp.float32)
    y = lax.conv_general_dilated(
        xb, wf, window_strides=(1, 1),
        padding=((padding, padding), (padding, padding)),
        rhs_dilation=(dilation, dilation),
        dimension_numbers=("NCHW", "OIHW", "NCHW"),
        precision=lax.Precision.HIGHEST)
    return jnp.maximum(y + bias[None, :, None, None], 0.0)


# ------------------------------- harness -----------------------------------

def _run_case(key, *, N, Cin, H, W, Cout, KH, KW, padding, dilation,
              nontrivial_bn=False):
    kx, kw, kb = jax.random.split(key, 3)
    x = jax.random.normal(kx, (N, Cin, H, W), dtype=jnp.float32)

    # kaiming_normal_ (fan_in, relu gain): std = sqrt(2 / (Cin*KH*KW))
    fan_in = Cin * KH * KW
    weight = jax.random.normal(kw, (Cout, Cin, KH, KW),
                               dtype=jnp.float32) * jnp.sqrt(2.0 / fan_in)

    if nontrivial_bn:
        g1, g2, g3, g4 = jax.random.split(kb, 4)
        bn_gamma = 0.5 + jax.random.uniform(g1, (Cout,), dtype=jnp.float32)
        bn_beta = 0.1 * jax.random.normal(g2, (Cout,), dtype=jnp.float32)
        bn_mean = 0.1 * jax.random.normal(g3, (Cout,), dtype=jnp.float32)
        bn_var = 0.5 + jax.random.uniform(g4, (Cout,), dtype=jnp.float32)
    else:
        # _init_weight: BN weight = 1, bias = 0 (fresh running stats 0 / 1).
        bn_gamma = jnp.ones((Cout,), jnp.float32)
        bn_beta = jnp.zeros((Cout,), jnp.float32)
        bn_mean = jnp.zeros((Cout,), jnp.float32)
        bn_var = jnp.ones((Cout,), jnp.float32)

    out = aspp_module_forward(x, weight, bn_gamma, bn_beta, bn_mean, bn_var,
                              padding=padding, dilation=dilation)
    out = jax.block_until_ready(out)

    Ho = H + 2 * padding - dilation * (KH - 1)
    Wo = W + 2 * padding - dilation * (KW - 1)
    assert out.shape == (N, Cout, Ho, Wo), out.shape

    # Tight check vs a reference doing the exact same math (bf16 operands,
    # f32 accumulation) -- differences are accumulation-order only.
    ref_t = _reference_bf16_inputs(x, weight, bn_gamma, bn_beta, bn_mean, bn_var,
                                   padding=padding, dilation=dilation)
    err_t = float(jnp.max(jnp.abs(out - ref_t)))
    assert jnp.allclose(out, ref_t, rtol=1e-3, atol=1e-3), err_t

    # Sanity check vs pure-f32 module semantics (bf16 rounding of A/B is the
    # only difference).
    ref_f = _reference_f32(x, weight, bn_gamma, bn_beta, bn_mean, bn_var,
                           padding=padding, dilation=dilation)
    err_f = float(jnp.max(jnp.abs(out - ref_f)))
    assert jnp.allclose(out, ref_f, rtol=5e-2, atol=5e-2), err_f


if __name__ == "__main__":
    k1, k2, k3 = jax.random.split(jax.random.PRNGKey(0), 3)

    # Small dilated 3x3 ASPP branch (single Cout tile, Cin padded 4 -> 128).
    _run_case(k1, N=2, Cin=4, H=16, W=16, Cout=8, KH=3, KW=3,
              padding=2, dilation=2)

    # Odd spatial size, non-128-multiple Cin, several Cout tiles (nco > 1),
    # non-trivial BN running statistics.
    _run_case(k2, N=1, Cin=96, H=15, W=13, Cout=320, KH=3, KW=3,
              padding=3, dilation=3, nontrivial_bn=True)

    # 1x1 ASPP branch (kernel_size=1, padding=0, dilation=1).
    _run_case(k3, N=2, Cin=32, H=8, W=8, Cout=64, KH=1, KW=1,
              padding=0, dilation=1)

    print("KERNEL_OK")
</pallas_src>

<mosaic_0001>
module attributes {stable_mosaic.version = 11 : i64} {
  func.func @kernel(%arg0: i32, %arg1: i32, %arg2: i32, %arg3: memref<1x1x3x16x128xbf16, #tpu.memory_space<vmem>>, %arg4: memref<1x1x3x16x128xbf16, #tpu.memory_space<vmem>>, %arg5: memref<1x1x3x16x128xbf16, #tpu.memory_space<vmem>>, %arg6: memref<9x128x128xbf16, #tpu.memory_space<vmem>>, %arg7: memref<1x128xf32, #tpu.memory_space<vmem>>, %arg8: memref<1x1x16x128xf32, #tpu.memory_space<vmem>>) attributes {dimension_semantics = [#tpu.dimension_semantics<parallel>, #tpu.dimension_semantics<parallel>, #tpu.dimension_semantics<parallel>], iteration_bounds = array<i64: 1, 2, 16>, scalar_prefetch = 0 : i64, scratch_operands = 0 : i64, tpu.core_type = #tpu.core_type<tc>, window_params = [{transform_indices = @transform_0, window_bounds = array<i64: 1, 1, 3, 16, 128>}, {transform_indices = @transform_1, window_bounds = array<i64: 1, 1, 3, 16, 128>}, {transform_indices = @transform_2, window_bounds = array<i64: 1, 1, 3, 16, 128>}, {transform_indices = @transform_3, window_bounds = array<i64: 9, 128, 128>}, {transform_indices = @transform_4, window_bounds = array<i64: 1, 128>}, {transform_indices = @transform_5, window_bounds = array<i64: 1, 1, 16, 128>}]} {
    %c0 = arith.constant 0 : index
    %c0_0 = arith.constant 0 : index
    %c0_1 = arith.constant 0 : index
    %c0_2 = arith.constant 0 : index
    %c0_3 = arith.constant 0 : index
    %0 = vector.load %arg3[%c0, %c0_0, %c0_1, %c0_2, %c0_3] : memref<1x1x3x16x128xbf16, #tpu.memory_space<vmem>>, vector<1x1x1x16x128xbf16>
    %1 = vector.shape_cast %0 : vector<1x1x1x16x128xbf16> to vector<16x128xbf16>
    %c0_4 = arith.constant 0 : index
    %c0_5 = arith.constant 0 : index
    %c0_6 = arith.constant 0 : index
    %2 = vector.load %arg6[%c0_4, %c0_5, %c0_6] : memref<9x128x128xbf16, #tpu.memory_space<vmem>>, vector<1x128x128xbf16>
    %3 = vector.shape_cast %2 : vector<1x128x128xbf16> to vector<128x128xbf16>
    %cst = arith.constant dense<0.000000e+00> : vector<16x128xf32>
    %4 = tpu.matmul %1, %3, %cst {dimension_numbers = #tpu.dot_dimension_numbers<[1], [0], [0], [1], [0, 0, 1, 1], [], []>} : vector<16x128xbf16>, vector<128x128xbf16>, vector<16x128xf32> -> vector<16x128xf32>
    %c0_7 = arith.constant 0 : index
    %c0_8 = arith.constant 0 : index
    %c1 = arith.constant 1 : index
    %c0_9 = arith.constant 0 : index
    %c0_10 = arith.constant 0 : index
    %5 = vector.load %arg3[%c0_7, %c0_8, %c1, %c0_9, %c0_10] : memref<1x1x3x16x128xbf16, #tpu.memory_space<vmem>>, vector<1x1x1x16x128xbf16>
    %6 = vector.shape_cast %5 : vector<1x1x1x16x128xbf16> to vector<16x128xbf16>
    %c1_11 = arith.constant 1 : index
    %c0_12 = arith.constant 0 : index
    %c0_13 = arith.constant 0 : index
    %7 = vector.load %arg6[%c1_11, %c0_12, %c0_13] : memref<9x128x128xbf16, #tpu.memory_space<vmem>>, vector<1x128x128xbf16>
    %8 = vector.shape_cast %7 : vector<1x128x128xbf16> to vector<128x128xbf16>
    %cst_14 = arith.constant dense<0.000000e+00> : vector<16x128xf32>
    %9 = tpu.matmul %6, %8, %cst_14 {dimension_numbers = #tpu.dot_dimension_numbers<[1], [0], [0], [1], [0, 0, 1, 1], [], []>} : vector<16x128xbf16>, vector<128x128xbf16>, vector<16x128xf32> -> vector<16x128xf32>
    %10 = arith.addf %4, %9 : vector<16x128xf32>
    %c0_15 = arith.constant 0 : index
    %c0_16 = arith.constant 0 : index
    %c2 = arith.constant 2 : index
    %c0_17 = arith.constant 0 : index
    %c0_18 = arith.constant 0 : index
    %11 = vector.load %arg3[%c0_15, %c0_16, %c2, %c0_17, %c0_18] : memref<1x1x3x16x128xbf16, #tpu.memory_space<vmem>>, vector<1x1x1x16x128xbf16>
    %12 = vector.shape_cast %11 : vector<1x1x1x16x128xbf16> to vector<16x128xbf16>
    %c2_19 = arith.constant 2 : index
    %c0_20 = arith.constant 0 : index
    %c0_21 = arith.constant 0 : index
    %13 = vector.load %arg6[%c2_19, %c0_20, %c0_21] : memref<9x128x128xbf16, #tpu.memory_space<vmem>>, vector<1x128x128xbf16>
    %14 = vector.shape_cast %13 : vector<1x128x128xbf16> to vector<128x128xbf16>
    %cst_22 = arith.constant dense<0.000000e+00> : vector<16x128xf32>
    %15 = tpu.matmul %12, %14, %cst_22 {dimension_numbers = #tpu.dot_dimension_numbers<[1], [0], [0], [1], [0, 0, 1, 1], [], []>} : vector<16x128xbf16>, vector<128x128xbf16>, vector<16x128xf32> -> vector<16x128xf32>
    %16 = arith.addf %10, %15 : vector<16x128xf32>
    %c0_23 = arith.constant 0 : index
    %c0_24 = arith.constant 0 : index
    %c0_25 = arith.constant 0 : index
    %c0_26 = arith.constant 0 : index
    %c0_27 = arith.constant 0 : index
    %17 = vector.load %arg4[%c0_23, %c0_24, %c0_25, %c0_26, %c0_27] : memref<1x1x3x16x128xbf16, #tpu.memory_space<vmem>>, vector<1x1x1x16x128xbf16>
    %18 = vector.shape_cast %17 : vector<1x1x1x16x128xbf16> to vector<16x128xbf16>
    %c3 = arith.constant 3 : index
    %c0_28 = arith.constant 0 : index
    %c0_29 = arith.constant 0 : index
    %19 = vector.load %arg6[%c3, %c0_28, %c0_29] : memref<9x128x128xbf16, #tpu.memory_space<vmem>>, vector<1x128x128xbf16>
    %20 = vector.shape_cast %19 : vector<1x128x128xbf16> to vector<128x128xbf16>
    %cst_30 = arith.constant dense<0.000000e+00> : vector<16x128xf32>
    %21 = tpu.matmul %18, %20, %cst_30 {dimension_numbers = #tpu.dot_dimension_numbers<[1], [0], [0], [1], [0, 0, 1, 1], [], []>} : vector<16x128xbf16>, vector<128x128xbf16>, vector<16x128xf32> -> vector<16x128xf32>
    %22 = arith.addf %16, %21 : vector<16x128xf32>
    %c0_31 = arith.constant 0 : index
    %c0_32 = arith.constant 0 : index
    %c1_33 = arith.constant 1 : index
    %c0_34 = arith.constant 0 : index
    %c0_35 = arith.constant 0 : index
    %23 = vector.load %arg4[%c0_31, %c0_32, %c1_33, %c0_34, %c0_35] : memref<1x1x3x16x128xbf16, #tpu.memory_space<vmem>>, vector<1x1x1x16x128xbf16>
    %24 = vector.shape_cast %23 : vector<1x1x1x16x128xbf16> to vector<16x128xbf16>
    %c4 = arith.constant 4 : index
    %c0_36 = arith.constant 0 : index
    %c0_37 = arith.constant 0 : index
    %25 = vector.load %arg6[%c4, %c0_36, %c0_37] : memref<9x128x128xbf16, #tpu.memory_space<vmem>>, vector<1x128x128xbf16>
    %26 = vector.shape_cast %25 : vector<1x128x128xbf16> to vector<128x128xbf16>
    %cst_38 = arith.constant dense<0.000000e+00> : vector<16x128xf32>
    %27 = tpu.matmul %24, %26, %cst_38 {dimension_numbers = #tpu.dot_dimension_numbers<[1], [0], [0], [1], [0, 0, 1, 1], [], []>} : vector<16x128xbf16>, vector<128x128xbf16>, vector<16x128xf32> -> vector<16x128xf32>
    %28 = arith.addf %22, %27 : vector<16x128xf32>
    %c0_39 = arith.constant 0 : index
    %c0_40 = arith.constant 0 : index
    %c2_41 = arith.constant 2 : index
    %c0_42 = arith.constant 0 : index
    %c0_43 = arith.constant 0 : index
    %29 = vector.load %arg4[%c0_39, %c0_40, %c2_41, %c0_42, %c0_43] : memref<1x1x3x16x128xbf16, #tpu.memory_space<vmem>>, vector<1x1x1x16x128xbf16>
    %30 = vector.shape_cast %29 : vector<1x1x1x16x128xbf16> to vector<16x128xbf16>
    %c5 = arith.constant 5 : index
    %c0_44 = arith.constant 0 : index
    %c0_45 = arith.constant 0 : index
    %31 = vector.load %arg6[%c5, %c0_44, %c0_45] : memref<9x128x128xbf16, #tpu.memory_space<vmem>>, vector<1x128x128xbf16>
    %32 = vector.shape_cast %31 : vector<1x128x128xbf16> to vector<128x128xbf16>
    %cst_46 = arith.constant dense<0.000000e+00> : vector<16x128xf32>
    %33 = tpu.matmul %30, %32, %cst_46 {dimension_numbers = #tpu.dot_dimension_numbers<[1], [0], [0], [1], [0, 0, 1, 1], [], []>} : vector<16x128xbf16>, vector<128x128xbf16>, vector<16x128xf32> -> vector<16x128xf32>
    %34 = arith.addf %28, %33 : vector<16x128xf32>
    %c0_47 = arith.constant 0 : index
    %c0_48 = arith.constant 0 : index
    %c0_49 = arith.constant 0 : index
    %c0_50 = arith.constant 0 : index
    %c0_51 = arith.constant 0 : index
    %35 = vector.load %arg5[%c0_47, %c0_48, %c0_49, %c0_50, %c0_51] : memref<1x1x3x16x128xbf16, #tpu.memory_space<vmem>>, vector<1x1x1x16x128xbf16>
    %36 = vector.shape_cast %35 : vector<1x1x1x16x128xbf16> to vector<16x128xbf16>
    %c6 = arith.constant 6 : index
    %c0_52 = arith.constant 0 : index
    %c0_53 = arith.constant 0 : index
    %37 = vector.load %arg6[%c6, %c0_52, %c0_53] : memref<9x128x128xbf16, #tpu.memory_space<vmem>>, vector<1x128x128xbf16>
    %38 = vector.shape_cast %37 : vector<1x128x128xbf16> to vector<128x128xbf16>
    %cst_54 = arith.constant dense<0.000000e+00> : vector<16x128xf32>
    %39 = tpu.matmul %36, %38, %cst_54 {dimension_numbers = #tpu.dot_dimension_numbers<[1], [0], [0], [1], [0, 0, 1, 1], [], []>} : vector<16x128xbf16>, vector<128x128xbf16>, vector<16x128xf32> -> vector<16x128xf32>
    %40 = arith.addf %34, %39 : vector<16x128xf32>
    %c0_55 = arith.constant 0 : index
    %c0_56 = arith.constant 0 : index
    %c1_57 = arith.constant 1 : index
    %c0_58 = arith.constant 0 : index
    %c0_59 = arith.constant 0 : index
    %41 = vector.load %arg5[%c0_55, %c0_56, %c1_57, %c0_58, %c0_59] : memref<1x1x3x16x128xbf16, #tpu.memory_space<vmem>>, vector<1x1x1x16x128xbf16>
    %42 = vector.shape_cast %41 : vector<1x1x1x16x128xbf16> to vector<16x128xbf16>
    %c7 = arith.constant 7 : index
    %c0_60 = arith.constant 0 : index
    %c0_61 = arith.constant 0 : index
    %43 = vector.load %arg6[%c7, %c0_60, %c0_61] : memref<9x128x128xbf16, #tpu.memory_space<vmem>>, vector<1x128x128xbf16>
    %44 = vector.shape_cast %43 : vector<1x128x128xbf16> to vector<128x128xbf16>
    %cst_62 = arith.constant dense<0.000000e+00> : vector<16x128xf32>
    %45 = tpu.matmul %42, %44, %cst_62 {dimension_numbers = #tpu.dot_dimension_numbers<[1], [0], [0], [1], [0, 0, 1, 1], [], []>} : vector<16x128xbf16>, vector<128x128xbf16>, vector<16x128xf32> -> vector<16x128xf32>
    %46 = arith.addf %40, %45 : vector<16x128xf32>
    %c0_63 = arith.constant 0 : index
    %c0_64 = arith.constant 0 : index
    %c2_65 = arith.constant 2 : index
    %c0_66 = arith.constant 0 : index
    %c0_67 = arith.constant 0 : index
    %47 = vector.load %arg5[%c0_63, %c0_64, %c2_65, %c0_66, %c0_67] : memref<1x1x3x16x128xbf16, #tpu.memory_space<vmem>>, vector<1x1x1x16x128xbf16>
    %48 = vector.shape_cast %47 : vector<1x1x1x16x128xbf16> to vector<16x128xbf16>
    %c8 = arith.constant 8 : index
    %c0_68 = arith.constant 0 : index
    %c0_69 = arith.constant 0 : index
    %49 = vector.load %arg6[%c8, %c0_68, %c0_69] : memref<9x128x128xbf16, #tpu.memory_space<vmem>>, vector<1x128x128xbf16>
    %50 = vector.shape_cast %49 : vector<1x128x128xbf16> to vector<128x128xbf16>
    %cst_70 = arith.constant dense<0.000000e+00> : vector<16x128xf32>
    %51 = tpu.matmul %48, %50, %cst_70 {dimension_numbers = #tpu.dot_dimension_numbers<[1], [0], [0], [1], [0, 0, 1, 1], [], []>} : vector<16x128xbf16>, vector<128x128xbf16>, vector<16x128xf32> -> vector<16x128xf32>
    %52 = arith.addf %46, %51 : vector<16x128xf32>
    %c0_71 = arith.constant 0 : index
    %c0_72 = arith.constant 0 : index
    %53 = vector.load %arg7[%c0_71, %c0_72] : memref<1x128xf32, #tpu.memory_space<vmem>>, vector<1x128xf32>
    %54 = vector.broadcast %53 : vector<1x128xf32> to vector<16x128xf32>
    %55 = arith.addf %52, %54 : vector<16x128xf32>
    %cst_73 = arith.constant 0.000000e+00 : f32
    %56 = vector.broadcast %cst_73 : f32 to vector<16x128xf32>
    %57 = arith.maximumf %55, %56 : vector<16x128xf32>
    %c0_74 = arith.constant 0 : index
    %c0_75 = arith.constant 0 : index
    %c0_76 = arith.constant 0 : index
    %c0_77 = arith.constant 0 : index
    %58 = vector.load %arg8[%c0_74, %c0_75, %c0_76, %c0_77] : memref<1x1x16x128xf32, #tpu.memory_space<vmem>>, vector<1x1x16x128xf32>
    %59 = vector.shape_cast %58 : vector<1x1x16x128xf32> to vector<16x128xf32>
    %60 = vector.shape_cast %57 : vector<16x128xf32> to vector<1x1x16x128xf32>
    tpu.vector_store %arg8[%c0_74, %c0_75, %c0_76, %c0_77], %60 {strides = array<i32>} : memref<1x1x16x128xf32, #tpu.memory_space<vmem>>, vector<1x1x16x128xf32>,
    return
  }
  func.func @transform_0(%arg0: i32, %arg1: i32, %arg2: i32) -> (i32, i32, i32, i32, i32) {
    %c0_i32 = arith.constant 0 : i32
    %0 = arith.addi %arg2, %c0_i32 : i32
    %c0_i32_0 = arith.constant 0 : i32
    %c0_i32_1 = arith.constant 0 : i32
    %c0_i32_2 = arith.constant 0 : i32
    %c0_i32_3 = arith.constant 0 : i32
    return %arg1, %0, %c0_i32_0, %c0_i32_1, %c0_i32_2 : i32, i32, i32, i32, i32
  }
  func.func @transform_1(%arg0: i32, %arg1: i32, %arg2: i32) -> (i32, i32, i32, i32, i32) {
    %c2_i32 = arith.constant 2 : i32
    %0 = arith.addi %arg2, %c2_i32 : i32
    %c0_i32 = arith.constant 0 : i32
    %c0_i32_0 = arith.constant 0 : i32
    %c0_i32_1 = arith.constant 0 : i32
    %c0_i32_2 = arith.constant 0 : i32
    return %arg1, %0, %c0_i32, %c0_i32_0, %c0_i32_1 : i32, i32, i32, i32, i32
  }
  func.func @transform_2(%arg0: i32, %arg1: i32, %arg2: i32) -> (i32, i32, i32, i32, i32) {
    %c4_i32 = arith.constant 4 : i32
    %0 = arith.addi %arg2, %c4_i32 : i32
    %c0_i32 = arith.constant 0 : i32
    %c0_i32_0 = arith.constant 0 : i32
    %c0_i32_1 = arith.constant 0 : i32
    %c0_i32_2 = arith.constant 0 : i32
    return %arg1, %0, %c0_i32, %c0_i32_0, %c0_i32_1 : i32, i32, i32, i32, i32
  }
  func.func @transform_3(%arg0: i32, %arg1: i32, %arg2: i32) -> (i32, i32, i32) {
    %c0_i32 = arith.constant 0 : i32
    %c0_i32_0 = arith.constant 0 : i32
    %c0_i32_1 = arith.constant 0 : i32
    return %c0_i32, %c0_i32_0, %arg0 : i32, i32, i32
  }
  func.func @transform_4(%arg0: i32, %arg1: i32, %arg2: i32) -> (i32, i32) {
    %c0_i32 = arith.constant 0 : i32
    %c0_i32_0 = arith.constant 0 : i32
    return %c0_i32, %arg0 : i32, i32
  }
  func.func @transform_5(%arg0: i32, %arg1: i32, %arg2: i32) -> (i32, i32, i32, i32) {
    %c0_i32 = arith.constant 0 : i32
    %c0_i32_0 = arith.constant 0 : i32
    return %arg1, %arg2, %c0_i32, %arg0 : i32, i32, i32, i32
  }
}

</mosaic_0001>

<llo_original>
// kernel: tpu_custom_call.1
$region0: #{tpu_custom_call.1}
  #allocation0 [shape = 'u32[]', space=smem, size = 0x4, offset = 0x4, fixed_abs, tag = 'smem constant byte address 0x4 - core index']
  #allocation1 [shape = 'u32[144,128]{1,0:T(1,128)}', space=vmem, size = 0x12000, scoped, tag = 'internal scratch']
  %s0 = inlined_call_operand.hbm [shape: bf16[2,20,3,16,128], index: 0, kind: input, shape index: {}]
  %s1 = inlined_call_operand.hbm [shape: bf16[2,20,3,16,128], index: 1, kind: input, shape index: {}]
  %s2 = inlined_call_operand.hbm [shape: bf16[2,20,3,16,128], index: 2, kind: input, shape index: {}]
  %s3 = inlined_call_operand.hbm [shape: bf16[9,128,128], index: 3, kind: input, shape index: {}]
  %s4 = inlined_call_operand.vmem [shape: f32[1,128], index: 4, kind: input, shape index: {}]
  %s5 = inlined_call_operand.hbm [shape: f32[2,16,16,128], index: 5, kind: output, shape index: {}]
  %s6 = sld [smem:[#allocation0]]
  $region69: #{tpu_custom_call.1} parent=0
    _
  %s8 = ssub.s32 1, %s6
  %s9 = scalar_select 0, %s8, %s6
  $region1: #{tpu_custom_call.1} parent=0
    #allocation2 [shape = 'u8[24576]{0}', space=vmem, size = 0x6000, scoped, tag = 'input window, operand 0']
    #allocation3 [shape = 's32[2]{0}', space=sflag, size = 0x8, scoped, tag = 'scoped memory for tpu_custom_call.1']
    #allocation4 [shape = 's32[2]{0}', space=sflag, size = 0x8, scoped, tag = 'scoped memory for tpu_custom_call.1']
    #allocation5 [shape = 'u8[24576]{0}', space=vmem, size = 0x6000, scoped, tag = 'input window, operand 1']
    #allocation6 [shape = 's32[2]{0}', space=sflag, size = 0x8, scoped, tag = 'scoped memory for tpu_custom_call.1']
    #allocation7 [shape = 'u8[24576]{0}', space=vmem, size = 0x6000, scoped, tag = 'input window, operand 2']
    #allocation8 [shape = 'u8[294912]{0}', space=vmem, size = 0x48000, scoped, tag = 'input window, operand 3, single buffered']
    #allocation9 [shape = 's32[1]{0}', space=sflag, size = 0x4, scoped, tag = 'scoped memory for tpu_custom_call.1']
    #allocation10 [shape = 'u8[16384]{0}', space=vmem, size = 0x4000, scoped, tag = 'output window, operand 0']
    %10 = vsyncpa [#allocation3], 0
    %s11 = scalar_lea.sflag [#allocation3], 1
    %12 = vsyncpa %s11, 0
    %13 = vsyncpa [#allocation6], 0
    %s14 = scalar_lea.sflag [#allocation6], 1
    %15 = vsyncpa %s14, 0
    %16 = vsyncpa [#allocation9], 0
    %17 = vsyncpa [#allocation4], 0
    %s18 = scalar_lea.sflag [#allocation4], 1
    %19 = vsyncpa %s18, 0
    loop: start=0, step=1, limit=34
    $region2: #{tpu_custom_call.1} parent=1 // loop_pre_header
      _
    $region3: #{tpu_custom_call.1} parent=1 // loop_header
      %s21 = sphi 0, %s25
      %p22 = scmp.ge.s32.totalorder %s21, 34
      %s28 = sphi 0, %s47
      %s29 = sphi 0, %s43
      %s30 = sphi 0, %s39
      %s31 = sphi 0, %s28
      %s32 = sphi 0, %s29
      %s33 = sphi 0, %s30
      %s34 = sphi 0, %s31
      %s35 = sphi 0, %s32
      %s36 = sphi 0, %s33
      %s52 = sphi 0, %s54
      %s55 = sphi 0, %s52
      %s56 = sphi 0, %s55
      %s72 = sphi 0, %s56
      %s82 = sphi 0, %s84
      %s85 = sphi 0, %s82
      %s86 = sphi 0, %s85
      %s102 = sphi 0, %s86
      %s112 = sphi 0, %s114
      %s115 = sphi 0, %s112
      %s116 = sphi 0, %s115
      %s132 = sphi 0, %s116
      %s138 = sphi 0, %s140
      %s141 = sphi 0, %s138
      %s142 = sphi 0, %s141
      %s158 = sphi 0, %s142
      %s164 = sphi 0, %s166
      %s167 = sphi 0, %s164
      %s168 = sphi 0, %s167
      %s184 = sphi 0, %s168
      %s194 = sphi 0, %s196
      %s197 = sphi 0, %s194
      %s198 = sphi 0, %s197
      %s214 = sphi 0, %s198
    $region4: #{tpu_custom_call.1} parent=1 // loop_header_branch
      %24 = sbr.rel (%p22) target = $region8
    $region5: #{tpu_custom_call.1} parent=1 // loop_body
      %s26 = ssub.s32 %s21, 1
      %s27 = ssub.s32 %s21, 2
      %s37 = sadd.s32 1, %s30
      %p38 = scmp.ge.s32.totalorder %s37, 16
      %s39 = scalar_select %p38, 0, %s37
      %s40 = sadd.s32 1, %s29
      %s41 = scalar_select %p38, %s40, %s29
      %p42 = scmp.ge.s32.totalorder %s41, 2
      %s43 = scalar_select %p42, 0, %s41
      %s44 = sadd.s32 1, %s28
      %s45 = scalar_select %p42, %s44, %s28
      %p46 = scmp.ge.s32.totalorder %s45, 1
      %s47 = scalar_select %p46, 0, %s45
      %s48 = ssub.s32 %s29, %s43
      %s49 = ssub.s32 %s30, %s39
      %s50 = sor.u32 %s48, %s49
      %p51 = scmp.eq.s32.totalorder %s50, 0
      %s53 = sadd.s32 %s52, 1
      %s54 = scalar_select %p51, %s52, %s53
      %p57 = pneg %p51
      %p58 = scmp.eq.s32.totalorder %s21, 31
      %p59 = por %p57, %p58
      %p60 = scmp.ne.s32.totalorder %s52, %s55
      %p61 = scmp.eq.s32.totalorder %s21, 0
      %p62 = por %p60, %p61
      %p63 = scmp.ne.s32.totalorder %s52, %s55
      %p64 = scmp.eq.s32.totalorder %s26, 31
      %p65 = por %p63, %p64
      %p66 = scmp.ne.s32.totalorder %s55, %s56
      %p67 = scmp.eq.s32.totalorder %s26, 0
      %p68 = por %p66, %p67
      %p69 = scmp.ne.s32.totalorder %s55, %s56
      %p70 = scmp.eq.s32.totalorder %s27, 31
      %p71 = por %p69, %p70
      %p73 = scmp.ne.s32.totalorder %s56, %s72
      %p74 = scmp.eq.s32.totalorder %s27, 0
      %p75 = por %p73, %p74
      %s76 = sadd.s32 %s30, 2
      %s77 = sadd.s32 %s39, 2
      %s78 = ssub.s32 %s29, %s43
      %s79 = ssub.s32 %s76, %s77
      %s80 = sor.u32 %s78, %s79
      %p81 = scmp.eq.s32.totalorder %s80, 0
      %s83 = sadd.s32 %s82, 1
      %s84 = scalar_select %p81, %s82, %s83
      %p87 = pneg %p81
      %p88 = scmp.eq.s32.totalorder %s21, 31
      %p89 = por %p87, %p88
      %p90 = scmp.ne.s32.totalorder %s82, %s85
      %p91 = scmp.eq.s32.totalorder %s21, 0
      %p92 = por %p90, %p91
      %p93 = scmp.ne.s32.totalorder %s82, %s85
      %p94 = scmp.eq.s32.totalorder %s26, 31
      %p95 = por %p93, %p94
      %p96 = scmp.ne.s32.totalorder %s85, %s86
      %p97 = scmp.eq.s32.totalorder %s26, 0
      %p98 = por %p96, %p97
      %p99 = scmp.ne.s32.totalorder %s85, %s86
      %p100 = scmp.eq.s32.totalorder %s27, 31
      %p101 = por %p99, %p100
      %p103 = scmp.ne.s32.totalorder %s86, %s102
      %p104 = scmp.eq.s32.totalorder %s27, 0
      %p105 = por %p103, %p104
      %s106 = sadd.s32 %s30, 4
      %s107 = sadd.s32 %s39, 4
      %s108 = ssub.s32 %s29, %s43
      %s109 = ssub.s32 %s106, %s107
      %s110 = sor.u32 %s108, %s109
      %p111 = scmp.eq.s32.totalorder %s110, 0
      %s113 = sadd.s32 %s112, 1
      %s114 = scalar_select %p111, %s112, %s113
      %p117 = pneg %p111
      %p118 = scmp.eq.s32.totalorder %s21, 31
      %p119 = por %p117, %p118
      %p120 = scmp.ne.s32.totalorder %s112, %s115
      %p121 = scmp.eq.s32.totalorder %s21, 0
      %p122 = por %p120, %p121
      %p123 = scmp.ne.s32.totalorder %s112, %s115
      %p124 = scmp.eq.s32.totalorder %s26, 31
      %p125 = por %p123, %p124
      %p126 = scmp.ne.s32.totalorder %s115, %s116
      %p127 = scmp.eq.s32.totalorder %s26, 0
      %p128 = por %p126, %p127
      %p129 = scmp.ne.s32.totalorder %s115, %s116
      %p130 = scmp.eq.s32.totalorder %s27, 31
      %p131 = por %p129, %p130
      %p133 = scmp.ne.s32.totalorder %s116, %s132
      %p134 = scmp.eq.s32.totalorder %s27, 0
      %p135 = por %p133, %p134
      %s136 = ssub.s32 %s28, %s47
      %p137 = scmp.eq.s32.totalorder %s136, 0
      %s139 = sadd.s32 %s138, 1
      %s140 = scalar_select %p137, %s138, %s139
      %p143 = pneg %p137
      %p144 = scmp.eq.s32.totalorder %s21, 31
      %p145 = por %p143, %p144
      %p146 = scmp.ne.s32.totalorder %s138, %s141
      %p147 = scmp.eq.s32.totalorder %s21, 0
      %p148 = por %p146, %p147
      %p149 = scmp.ne.s32.totalorder %s138, %s141
      %p150 = scmp.eq.s32.totalorder %s26, 31
      %p151 = por %p149, %p150
      %p152 = scmp.ne.s32.totalorder %s141, %s142
      %p153 = scmp.eq.s32.totalorder %s26, 0
      %p154 = por %p152, %p153
      %p155 = scmp.ne.s32.totalorder %s141, %s142
      %p156 = scmp.eq.s32.totalorder %s27, 31
      %p157 = por %p155, %p156
      %p159 = scmp.ne.s32.totalorder %s142, %s158
      %p160 = scmp.eq.s32.totalorder %s27, 0
      %p161 = por %p159, %p160
      %s162 = ssub.s32 %s28, %s47
      %p163 = scmp.eq.s32.totalorder %s162, 0
      %s165 = sadd.s32 %s164, 1
      %s166 = scalar_select %p163, %s164, %s165
      %p169 = pneg %p163
      %p170 = scmp.eq.s32.totalorder %s21, 31
      %p171 = por %p169, %p170
      %p172 = scmp.ne.s32.totalorder %s164, %s167
      %p173 = scmp.eq.s32.totalorder %s21, 0
      %p174 = por %p172, %p173
      %p175 = scmp.ne.s32.totalorder %s164, %s167
      %p176 = scmp.eq.s32.totalorder %s26, 31
      %p177 = por %p175, %p176
      %p178 = scmp.ne.s32.totalorder %s167, %s168
      %p179 = scmp.eq.s32.totalorder %s26, 0
      %p180 = por %p178, %p179
      %p181 = scmp.ne.s32.totalorder %s167, %s168
      %p182 = scmp.eq.s32.totalorder %s27, 31
      %p183 = por %p181, %p182
      %p185 = scmp.ne.s32.totalorder %s168, %s184
      %p186 = scmp.eq.s32.totalorder %s27, 0
      %p187 = por %p185, %p186
      %s188 = ssub.s32 %s29, %s43
      %s189 = ssub.s32 %s30, %s39
      %s190 = sor.u32 %s188, %s189
      %s191 = ssub.s32 %s28, %s47
      %s192 = sor.u32 %s190, %s191
      %p193 = scmp.eq.s32.totalorder %s192, 0
      %s195 = sadd.s32 %s194, 1
      %s196 = scalar_select %p193, %s194, %s195
      %p199 = pneg %p193
      %p200 = scmp.eq.s32.totalorder %s21, 31
      %p201 = por %p199, %p200
      %p202 = scmp.ne.s32.totalorder %s194, %s197
      %p203 = scmp.eq.s32.totalorder %s21, 0
      %p204 = por %p202, %p203
      %p205 = scmp.ne.s32.totalorder %s194, %s197
      %p206 = scmp.eq.s32.totalorder %s26, 31
      %p207 = por %p205, %p206
      %p208 = scmp.ne.s32.totalorder %s197, %s198
      %p209 = scmp.eq.s32.totalorder %s26, 0
      %p210 = por %p208, %p209
      %p211 = scmp.ne.s32.totalorder %s197, %s198
      %p212 = scmp.eq.s32.totalorder %s27, 31
      %p213 = por %p211, %p212
      %p215 = scmp.ne.s32.totalorder %s198, %s214
      %p216 = scmp.eq.s32.totalorder %s27, 0
      %p217 = por %p215, %p216
      %p218 = scmp.le.s32.totalorder 1, %s21
      %p219 = scmp.lt.s32.totalorder %s21, 33
      %p220 = pnand %p218, %p219
      %p221 = pneg %p220
      // Predicated region
      $region9: #{tpu_custom_call.1} parent=5 // pred_check
        _
      $region10: #{tpu_custom_call.1} parent=5 // pred_check_branch
        %223 = sbr.rel (%p220) target = $region12
      $region11: #{tpu_custom_call.1} parent=5 // pred_region
        %s224 = ssub.s32 %s21, 1
        // Predicated region
        $region13: #{tpu_custom_call.1} parent=11 // pred_check
          %p225 = pneg %p154
        $region14: #{tpu_custom_call.1} parent=11 // pred_check_branch
          %227 = sbr.rel (%p225) target = $region16
        $region15: #{tpu_custom_call.1} parent=11 // pred_region
          %s229 = ssub.s32 9216, 9216
          %230 = vsyncadd [#allocation9], %s229
          %s231 = smul.addr %s31, 64
          %s232 = scalar_lea.hbm %s3, %s231
          %s233 = sshll.u32 [#allocation8], 4
          %s234 = int_to_ptr.vmem [resolvable:$true] %s233
          %239 = dma.hbm_to_vmem [thread:$0]  %s232, 9216, %s234, [#allocation9], 64, 64, 4
        $region16: #{tpu_custom_call.1} parent=11 // pred_fallthru
          _
        // Predicated region
        $region17: #{tpu_custom_call.1} parent=11 // pred_check
          %p240 = pneg %p180
        $region18: #{tpu_custom_call.1} parent=11 // pred_check_branch
          %242 = sbr.rel (%p240) target = $region20
        $region19: #{tpu_custom_call.1} parent=11 // pred_region
          %p243 = scmp.lt.s32.totalorder %s31, 0
          %s244 = scalar_select %p243, %s31, 0
          %s245 = scalar_lea.vmem %s4, %s244
        $region20: #{tpu_custom_call.1} parent=11 // pred_fallthru
          _
      $region12: #{tpu_custom_call.1} parent=5 // pred_fallthru
        _
      %p246 = scmp.lt.s32.totalorder %s21, 32
      // Predicated region
      $region21: #{tpu_custom_call.1} parent=5 // pred_check
        %p247 = pneg %p246
      $region22: #{tpu_custom_call.1} parent=5 // pred_check_branch
        %249 = sbr.rel (%p247) target = $region24
      $region23: #{tpu_custom_call.1} parent=5 // pred_region
        // Predicated region
        $region25: #{tpu_custom_call.1} parent=23 // pred_check
          %p250 = pneg %p62
        $region26: #{tpu_custom_call.1} parent=23 // pred_check_branch
          %252 = sbr.rel (%p250) target = $region28
        $region27: #{tpu_custom_call.1} parent=23 // pred_region
          %s253 = sand.u32 %s52, 1
          %s254 = scalar_lea.sflag [#allocation3], %s253
          %s255 = sand.u32 %s52, 1
          %s256 = smul.addr %s255, 24
          %s257 = scalar_lea.vmem [#allocation2], %s256
          %s259 = ssub.s32 384, 384
          %260 = vsyncadd %s254, %s259
          %s261 = smul.addr %s30, 6
          %s262 = smul.addr %s29, 120
          %s263 = sadd.s32 %s261, %s262
          %s264 = smul.addr %s263, 64
          %s265 = scalar_lea.hbm %s0, %s264
          %s266 = sshll.u32 %s257, 4
          %s267 = int_to_ptr.vmem [resolvable:$true] %s266
          %272 = dma.hbm_to_vmem [thread:$0]  %s265, 384, %s267, %s254, 64, 64, 4
        $region28: #{tpu_custom_call.1} parent=23 // pred_fallthru
          _
        // Predicated region
        $region29: #{tpu_custom_call.1} parent=23 // pred_check
          %p273 = pneg %p92
        $region30: #{tpu_custom_call.1} parent=23 // pred_check_branch
          %275 = sbr.rel (%p273) target = $region32
        $region31: #{tpu_custom_call.1} parent=23 // pred_region
          %s276 = sand.u32 %s21, 1
          %s277 = scalar_lea.sflag [#allocation6], %s276
          %s278 = sand.u32 %s82, 1
          %s279 = smul.addr %s278, 24
          %s280 = scalar_lea.vmem [#allocation5], %s279
          %s281 = sadd.s32 %s30, 2
          %s283 = ssub.s32 384, 384
          %284 = vsyncadd %s277, %s283
          %s285 = smul.addr %s281, 6
          %s286 = smul.addr %s29, 120
          %s287 = sadd.s32 %s285, %s286
          %s288 = smul.addr %s287, 64
          %s289 = scalar_lea.hbm %s1, %s288
          %s290 = sshll.u32 %s280, 4
          %s291 = int_to_ptr.vmem [resolvable:$true] %s290
          %296 = dma.hbm_to_vmem [thread:$0]  %s289, 384, %s291, %s277, 64, 64, 4
        $region32: #{tpu_custom_call.1} parent=23 // pred_fallthru
          _
        // Predicated region
        $region33: #{tpu_custom_call.1} parent=23 // pred_check
          %p297 = pneg %p122
        $region34: #{tpu_custom_call.1} parent=23 // pred_check_branch
          %299 = sbr.rel (%p297) target = $region36
        $region35: #{tpu_custom_call.1} parent=23 // pred_region
          %s300 = sand.u32 %s21, 1
          %s301 = scalar_lea.sflag [#allocation6], %s300
          %s302 = sand.u32 %s112, 1
          %s303 = smul.addr %s302, 24
          %s304 = scalar_lea.vmem [#allocation7], %s303
          %s305 = sadd.s32 %s30, 4
          %s307 = ssub.s32 384, 384
          %308 = vsyncadd %s301, %s307
          %s309 = smul.addr %s305, 6
          %s310 = smul.addr %s29, 120
          %s311 = sadd.s32 %s309, %s310
          %s312 = smul.addr %s311, 64
          %s313 = scalar_lea.hbm %s2, %s312
          %s314 = sshll.u32 %s304, 4
          %s315 = int_to_ptr.vmem [resolvable:$true] %s314
          %320 = dma.hbm_to_vmem [thread:$0]  %s313, 384, %s315, %s301, 64, 64, 4
        $region36: #{tpu_custom_call.1} parent=23 // pred_fallthru
          _
      $region24: #{tpu_custom_call.1} parent=5 // pred_fallthru
        _
      %p321 = scmp.le.s32.totalorder 1, %s21
      %p322 = scmp.lt.s32.totalorder %s21, 33
      %p323 = pnand %p321, %p322
      %p324 = pneg %p323
      // Predicated region
      $region37: #{tpu_custom_call.1} parent=5 // pred_check
        _
      $region38: #{tpu_custom_call.1} parent=5 // pred_check_branch
        %326 = sbr.rel (%p323) target = $region40
      $region39: #{tpu_custom_call.1} parent=5 // pred_region
        %s327 = ssub.s32 %s21, 1
        %s328 = sand.u32 %s55, 1
        %s329 = scalar_lea.sflag [#allocation3], %s328
        %s330 = sand.u32 %s55, 1
        %s331 = smul.addr %s330, 24
        %s332 = scalar_lea.vmem [#allocation2], %s331
        // Predicated region
        $region41: #{tpu_custom_call.1} parent=39 // pred_check
          %p333 = pneg %p68
        $region42: #{tpu_custom_call.1} parent=39 // pred_check_branch
          %335 = sbr.rel (%p333) target = $region44
        $region43: #{tpu_custom_call.1} parent=39 // pred_region
          %336 = dma.done %s329, 384
        $region44: #{tpu_custom_call.1} parent=39 // pred_fallthru
          _
        %s337 = sand.u32 %s26, 1
        %s338 = scalar_lea.sflag [#allocation6], %s337
        %s339 = sand.u32 %s85, 1
        %s340 = smul.addr %s339, 24
        %s341 = scalar_lea.vmem [#allocation5], %s340
        // Predicated region
        $region45: #{tpu_custom_call.1} parent=39 // pred_check
          %p342 = pneg %p98
        $region46: #{tpu_custom_call.1} parent=39 // pred_check_branch
          %344 = sbr.rel (%p342) target = $region48
        $region47: #{tpu_custom_call.1} parent=39 // pred_region
          %345 = dma.done %s338, 384
        $region48: #{tpu_custom_call.1} parent=39 // pred_fallthru
          _
        %s346 = sand.u32 %s26, 1
        %s347 = scalar_lea.sflag [#allocation6], %s346
        %s348 = sand.u32 %s115, 1
        %s349 = smul.addr %s348, 24
        %s350 = scalar_lea.vmem [#allocation7], %s349
        // Predicated region
        $region49: #{tpu_custom_call.1} parent=39 // pred_check
          %p351 = pneg %p128
        $region50: #{tpu_custom_call.1} parent=39 // pred_check_branch
          %353 = sbr.rel (%p351) target = $region52
        $region51: #{tpu_custom_call.1} parent=39 // pred_region
          %354 = dma.done %s347, 384
        $region52: #{tpu_custom_call.1} parent=39 // pred_fallthru
          _
        // Predicated region
        $region53: #{tpu_custom_call.1} parent=39 // pred_check
          %p355 = pneg %p154
        $region54: #{tpu_custom_call.1} parent=39 // pred_check_branch
          %357 = sbr.rel (%p355) target = $region56
        $region55: #{tpu_custom_call.1} parent=39 // pred_region
          %358 = dma.done [#allocation9], 9216
        $region56: #{tpu_custom_call.1} parent=39 // pred_fallthru
          _
        %s359 = sand.u32 %s55, 1
        %s360 = scalar_lea.sflag [#allocation3], %s359
        %s361 = sand.u32 %s55, 1
        %s362 = smul.addr %s361, 24
        %s363 = scalar_lea.vmem [#allocation2], %s362
        %p364 = pneg %p68
        %p365 = pneg %p65
        %s366 = sand.u32 %s26, 1
        %s367 = scalar_lea.sflag [#allocation6], %s366
        %s368 = sand.u32 %s85, 1
        %s369 = smul.addr %s368, 24
        %s370 = scalar_lea.vmem [#allocation5], %s369
        %p371 = pneg %p98
        %p372 = pneg %p95
        %s373 = sand.u32 %s26, 1
        %s374 = scalar_lea.sflag [#allocation6], %s373
        %s375 = sand.u32 %s115, 1
        %s376 = smul.addr %s375, 24
        %s377 = scalar_lea.vmem [#allocation7], %s376
        %p378 = pneg %p128
        %p379 = pneg %p125
        %p380 = pneg %p154
        %p381 = pneg %p151
        %p382 = scmp.lt.s32.totalorder %s31, 0
        %s383 = scalar_select %p382, %s31, 0
        %s384 = scalar_lea.vmem %s4, %s383
        %p385 = pneg %p180
        %p386 = pneg %p177
        %p387 = pneg %p210
        %p388 = pneg %p207
        %s389 = sand.u32 %s197, 1
        %s390 = scalar_lea.sflag [#allocation4], %s389
        %s391 = sand.u32 %s197, 1
        %s392 = smul.addr %s391, 16
        %s393 = scalar_lea.vmem [#allocation10], %s392
        %s394 = sadd.s32 %s33, 2
        %s395 = sadd.s32 %s33, 4
        %p396 = scmp.lt.s32.totalorder %s31, 0
        %s397 = scalar_select %p396, %s31, 0
        %s398 = scalar_lea.vmem %s4, %s397
        %v400 = vld [vmem:[%s332] sm:$0xf]
        %v401 = vld [vmem:[%s332 + $0x4] sm:$0xf]
        %v402 = vld [vmem:[#allocation8] sm:$0xf]
        %v403 = vld [vmem:[#allocation8 + $0x4] sm:$0xf]
        %v404 = vld [vmem:[#allocation8 + $0x8] sm:$0xf]
        %v405 = vld [vmem:[#allocation8 + $0xc] sm:$0xf]
        %v406 = vld [vmem:[#allocation8 + $0x10] sm:$0xf]
        %v407 = vld [vmem:[#allocation8 + $0x14] sm:$0xf]
        %v408 = vld [vmem:[#allocation8 + $0x18] sm:$0xf]
        %v409 = vld [vmem:[#allocation8 + $0x1c] sm:$0xf]
        %v410 = vld [vmem:[#allocation8 + $0x20] sm:$0xf]
        %v411 = vld [vmem:[#allocation8 + $0x24] sm:$0xf]
        %v412 = vld [vmem:[#allocation8 + $0x28] sm:$0xf]
        %v413 = vld [vmem:[#allocation8 + $0x2c] sm:$0xf]
        %v414 = vld [vmem:[#allocation8 + $0x30] sm:$0xf]
        %v415 = vld [vmem:[#allocation8 + $0x34] sm:$0xf]
        %v416 = vld [vmem:[#allocation8 + $0x38] sm:$0xf]
        %v417 = vld [vmem:[#allocation8 + $0x3c] sm:$0xf]
        %s418 = scalar_lea.vmem %s332, 8 [#allocation2]
        %v419 = vld [vmem:[%s418] sm:$0xf]
        %v420 = vld [vmem:[%s418 + $0x4] sm:$0xf]
        %s421 = scalar_lea.vmem [#allocation8], 64
        %v422 = vld [vmem:[%s421] sm:$0xf]
        %v423 = vld [vmem:[%s421 + $0x4] sm:$0xf]
        %v424 = vld [vmem:[%s421 + $0x8] sm:$0xf]
        %v425 = vld [vmem:[%s421 + $0xc] sm:$0xf]
        %v426 = vld [vmem:[%s421 + $0x10] sm:$0xf]
        %v427 = vld [vmem:[%s421 + $0x14] sm:$0xf]
        %v428 = vld [vmem:[%s421 + $0x18] sm:$0xf]
        %v429 = vld [vmem:[%s421 + $0x1c] sm:$0xf]
        %v430 = vld [vmem:[%s421 + $0x20] sm:$0xf]
        %v431 = vld [vmem:[%s421 + $0x24] sm:$0xf]
        %v432 = vld [vmem:[%s421 + $0x28] sm:$0xf]
        %v433 = vld [vmem:[%s421 + $0x2c] sm:$0xf]
        %v434 = vld [vmem:[%s421 + $0x30] sm:$0xf]
        %v435 = vld [vmem:[%s421 + $0x34] sm:$0xf]
        %v436 = vld [vmem:[%s421 + $0x38] sm:$0xf]
        %v437 = vld [vmem:[%s421 + $0x3c] sm:$0xf]
        %v440 = vunpack.c.l.b16 %v419
        %v441 = vunpack.c.l.b16 %v420
        %v442 = vpack.c.b16 %v441, %v440
        %v460 = vunpack.c.l.b16 %v422
        %v461 = vunpack.c.l.b16 %v423
        %v462 = vunpack.c.l.b16 %v424
        %v463 = vunpack.c.l.b16 %v425
        %v464 = vunpack.c.l.b16 %v426
        %v465 = vunpack.c.l.b16 %v427
        %v466 = vunpack.c.l.b16 %v428
        %v467 = vunpack.c.l.b16 %v429
        %v468 = vunpack.c.l.b16 %v430
        %v469 = vunpack.c.l.b16 %v431
        %v470 = vunpack.c.l.b16 %v432
        %v471 = vunpack.c.l.b16 %v433
        %v472 = vunpack.c.l.b16 %v434
        %v473 = vunpack.c.l.b16 %v435
        %v474 = vunpack.c.l.b16 %v436
        %v475 = vunpack.c.l.b16 %v437
        %v476 = vpack.c.b16 %v461, %v460
        %v477 = vpack.c.b16 %v463, %v462
        %v478 = vpack.c.b16 %v465, %v464
        %v479 = vpack.c.b16 %v467, %v466
        %v480 = vpack.c.b16 %v469, %v468
        %v481 = vpack.c.b16 %v471, %v470
        %v482 = vpack.c.b16 %v473, %v472
        %v483 = vpack.c.b16 %v475, %v474
        %492 = vmatprep.subr.bf16.mxu0 0
        %493 = vmatpush1.bf16.msra.mxu0 %v476
        %494 = vmatprep.subr.bf16.mxu0 0
        %495 = vmatpush1.bf16.msra.mxu0 %v477
        %496 = vmatprep.subr.bf16.mxu0 0
        %497 = vmatpush1.bf16.msra.mxu0 %v478
        %498 = vmatprep.subr.bf16.mxu0 0
        %499 = vmatpush1.bf16.msra.mxu0 %v479
        %500 = vmatprep.subr.bf16.mxu0 0
        %501 = vmatpush1.bf16.msra.mxu0 %v480
        %502 = vmatprep.subr.bf16.mxu0 0
        %503 = vmatpush1.bf16.msra.mxu0 %v481
        %504 = vmatprep.subr.bf16.mxu0 0
        %505 = vmatpush1.bf16.msra.mxu0 %v482
        %506 = vmatprep.subr.bf16.mxu0 0
        %507 = vmatpush1.bf16.msra.mxu0 %v483
        %508 = vmatprep.subr.bf16.mxu0 0
        %509 = vmatpush1.bf16.msra.mxu0 0
        %510 = vmatprep.subr.bf16.mxu0 0
        %511 = vmatpush1.bf16.msra.mxu0 0
        %512 = vmatprep.subr.bf16.mxu0 0
        %513 = vmatpush1.bf16.msra.mxu0 0
        %514 = vmatprep.subr.bf16.mxu0 0
        %515 = vmatpush1.bf16.msra.mxu0 0
        %516 = vmatprep.subr.bf16.mxu0 0
        %517 = vmatpush1.bf16.msra.mxu0 0
        %518 = vmatprep.subr.bf16.mxu0 0
        %519 = vmatpush1.bf16.msra.mxu0 0
        %520 = vmatprep.subr.bf16.mxu0 0
        %521 = vmatpush1.bf16.msra.mxu0 0
        %522 = vmatprep.subr.bf16.mxu0 0
        %523 = vmatpush1.bf16.msra.mxu0 0
        %524 = vmatprep.mubr.bf16.mxu0 0
        %525 = vmatmul.mubr.bf16.gmra.mrb[0].mxu0 %v442
        %v526 = vpop.f32.mrb[0].mxu0
        %v527 = vadd.f32 0.0, %v526
        %v528 = vpop.f32.mrb[0].mxu0
        %v529 = vpop.f32.mrb[0].mxu0
        %v530 = vadd.f32 0.0, %v529
        %v531 = vpop.f32.mrb[0].mxu0
        %532 = vdwg.mxu0
        %v535 = vunpack.c.l.b16 %v400
        %v536 = vunpack.c.l.b16 %v401
        %v537 = vpack.c.b16 %v536, %v535
        %v555 = vunpack.c.l.b16 %v402
        %v556 = vunpack.c.l.b16 %v403
        %v557 = vunpack.c.l.b16 %v404
        %v558 = vunpack.c.l.b16 %v405
        %v559 = vunpack.c.l.b16 %v406
        %v560 = vunpack.c.l.b16 %v407
        %v561 = vunpack.c.l.b16 %v408
        %v562 = vunpack.c.l.b16 %v409
        %v563 = vunpack.c.l.b16 %v410
        %v564 = vunpack.c.l.b16 %v411
        %v565 = vunpack.c.l.b16 %v412
        %v566 = vunpack.c.l.b16 %v413
        %v567 = vunpack.c.l.b16 %v414
        %v568 = vunpack.c.l.b16 %v415
        %v569 = vunpack.c.l.b16 %v416
        %v570 = vunpack.c.l.b16 %v417
        %v571 = vpack.c.b16 %v556, %v555
        %v572 = vpack.c.b16 %v558, %v557
        %v573 = vpack.c.b16 %v560, %v559
        %v574 = vpack.c.b16 %v562, %v561
        %v575 = vpack.c.b16 %v564, %v563
        %v576 = vpack.c.b16 %v566, %v565
        %v577 = vpack.c.b16 %v568, %v567
        %v578 = vpack.c.b16 %v570, %v569
        %587 = vmatprep.subr.bf16.mxu0 0
        %588 = vmatpush1.bf16.msra.mxu0 %v571
        %589 = vmatprep.subr.bf16.mxu0 0
        %590 = vmatpush1.bf16.msra.mxu0 %v572
        %591 = vmatprep.subr.bf16.mxu0 0
        %592 = vmatpush1.bf16.msra.mxu0 %v573
        %593 = vmatprep.subr.bf16.mxu0 0
        %594 = vmatpush1.bf16.msra.mxu0 %v574
        %595 = vmatprep.subr.bf16.mxu0 0
        %596 = vmatpush1.bf16.msra.mxu0 %v575
        %597 = vmatprep.subr.bf16.mxu0 0
        %598 = vmatpush1.bf16.msra.mxu0 %v576
        %599 = vmatprep.subr.bf16.mxu0 0
        %600 = vmatpush1.bf16.msra.mxu0 %v577
        %601 = vmatprep.subr.bf16.mxu0 0
        %602 = vmatpush1.bf16.msra.mxu0 %v578
        %603 = vmatprep.subr.bf16.mxu0 0
        %604 = vmatpush1.bf16.msra.mxu0 0
        %605 = vmatprep.subr.bf16.mxu0 0
        %606 = vmatpush1.bf16.msra.mxu0 0
        %607 = vmatprep.subr.bf16.mxu0 0
        %608 = vmatpush1.bf16.msra.mxu0 0
        %609 = vmatprep.subr.bf16.mxu0 0
        %610 = vmatpush1.bf16.msra.mxu0 0
        %611 = vmatprep.subr.bf16.mxu0 0
        %612 = vmatpush1.bf16.msra.mxu0 0
        %613 = vmatprep.subr.bf16.mxu0 0
        %614 = vmatpush1.bf16.msra.mxu0 0
        %615 = vmatprep.subr.bf16.mxu0 0
        %616 = vmatpush1.bf16.msra.mxu0 0
        %617 = vmatprep.subr.bf16.mxu0 0
        %618 = vmatpush1.bf16.msra.mxu0 0
        %619 = vmatprep.mubr.bf16.mxu0 0
        %620 = vmatmul.mubr.bf16.gmra.mrb[0].mxu0 %v537
        %v621 = vpop.f32.mrb[0].mxu0
        %v622 = vadd.f32 %v527, %v621
        %v623 = vpop.f32.mrb[0].mxu0
        %v624 = vpop.f32.mrb[0].mxu0
        %v625 = vadd.f32 %v530, %v624
        %v626 = vpop.f32.mrb[0].mxu0
        %627 = vdwg.mxu0
        %s628 = scalar_lea.vmem %s332, 16 [#allocation2]
        %v629 = vld [vmem:[%s628] sm:$0xf]
        %v630 = vld [vmem:[%s628 + $0x4] sm:$0xf]
        %s631 = scalar_lea.vmem [#allocation8], 128
        %v632 = vld [vmem:[%s631] sm:$0xf]
        %v633 = vld [vmem:[%s631 + $0x4] sm:$0xf]
        %v634 = vld [vmem:[%s631 + $0x8] sm:$0xf]
        %v635 = vld [vmem:[%s631 + $0xc] sm:$0xf]
        %v636 = vld [vmem:[%s631 + $0x10] sm:$0xf]
        %v637 = vld [vmem:[%s631 + $0x14] sm:$0xf]
        %v638 = vld [vmem:[%s631 + $0x18] sm:$0xf]
        %v639 = vld [vmem:[%s631 + $0x1c] sm:$0xf]
        %v640 = vld [vmem:[%s631 + $0x20] sm:$0xf]
        %v641 = vld [vmem:[%s631 + $0x24] sm:$0xf]
        %v642 = vld [vmem:[%s631 + $0x28] sm:$0xf]
        %v643 = vld [vmem:[%s631 + $0x2c] sm:$0xf]
        %v644 = vld [vmem:[%s631 + $0x30] sm:$0xf]
        %v645 = vld [vmem:[%s631 + $0x34] sm:$0xf]
        %v646 = vld [vmem:[%s631 + $0x38] sm:$0xf]
        %v647 = vld [vmem:[%s631 + $0x3c] sm:$0xf]
        %v650 = vunpack.c.l.b16 %v629
        %v651 = vunpack.c.l.b16 %v630
        %v652 = vpack.c.b16 %v651, %v650
        %v670 = vunpack.c.l.b16 %v632
        %v671 = vunpack.c.l.b16 %v633
        %v672 = vunpack.c.l.b16 %v634
        %v673 = vunpack.c.l.b16 %v635
        %v674 = vunpack.c.l.b16 %v636
        %v675 = vunpack.c.l.b16 %v637
        %v676 = vunpack.c.l.b16 %v638
        %v677 = vunpack.c.l.b16 %v639
        %v678 = vunpack.c.l.b16 %v640
        %v679 = vunpack.c.l.b16 %v641
        %v680 = vunpack.c.l.b16 %v642
        %v681 = vunpack.c.l.b16 %v643
        %v682 = vunpack.c.l.b16 %v644
        %v683 = vunpack.c.l.b16 %v645
        %v684 = vunpack.c.l.b16 %v646
        %v685 = vunpack.c.l.b16 %v647
        %v686 = vpack.c.b16 %v671, %v670
        %v687 = vpack.c.b16 %v673, %v672
        %v688 = vpack.c.b16 %v675, %v674
        %v689 = vpack.c.b16 %v677, %v676
        %v690 = vpack.c.b16 %v679, %v678
        %v691 = vpack.c.b16 %v681, %v680
        %v692 = vpack.c.b16 %v683, %v682
        %v693 = vpack.c.b16 %v685, %v684
        %702 = vmatprep.subr.bf16.mxu0 0
        %703 = vmatpush1.bf16.msra.mxu0 %v686
        %704 = vmatprep.subr.bf16.mxu0 0
        %705 = vmatpush1.bf16.msra.mxu0 %v687
        %706 = vmatprep.subr.bf16.mxu0 0
        %707 = vmatpush1.bf16.msra.mxu0 %v688
        %708 = vmatprep.subr.bf16.mxu0 0
        %709 = vmatpush1.bf16.msra.mxu0 %v689
        %710 = vmatprep.subr.bf16.mxu0 0
        %711 = vmatpush1.bf16.msra.mxu0 %v690
        %712 = vmatprep.subr.bf16.mxu0 0
        %713 = vmatpush1.bf16.msra.mxu0 %v691
        %714 = vmatprep.subr.bf16.mxu0 0
        %715 = vmatpush1.bf16.msra.mxu0 %v692
        %716 = vmatprep.subr.bf16.mxu0 0
        %717 = vmatpush1.bf16.msra.mxu0 %v693
        %718 = vmatprep.subr.bf16.mxu0 0
        %719 = vmatpush1.bf16.msra.mxu0 0
        %720 = vmatprep.subr.bf16.mxu0 0
        %721 = vmatpush1.bf16.msra.mxu0 0
        %722 = vmatprep.subr.bf16.mxu0 0
        %723 = vmatpush1.bf16.msra.mxu0 0
        %724 = vmatprep.subr.bf16.mxu0 0
        %725 = vmatpush1.bf16.msra.mxu0 0
        %726 = vmatprep.subr.bf16.mxu0 0
        %727 = vmatpush1.bf16.msra.mxu0 0
        %728 = vmatprep.subr.bf16.mxu0 0
        %729 = vmatpush1.bf16.msra.mxu0 0
        %730 = vmatprep.subr.bf16.mxu0 0
        %731 = vmatpush1.bf16.msra.mxu0 0
        %732 = vmatprep.subr.bf16.mxu0 0
        %733 = vmatpush1.bf16.msra.mxu0 0
        %734 = vmatprep.mubr.bf16.mxu0 0
        %735 = vmatmul.mubr.bf16.gmra.mrb[0].mxu0 %v652
        %v736 = vpop.f32.mrb[0].mxu0
        %v737 = vadd.f32 0.0, %v736
        %v738 = vpop.f32.mrb[0].mxu0
        %v739 = vpop.f32.mrb[0].mxu0
        %v740 = vadd.f32 0.0, %v739
        %v741 = vpop.f32.mrb[0].mxu0
        %742 = vdwg.mxu0
        %v743 = vadd.f32 %v622, %v737
        %v744 = vadd.f32 %v625, %v740
        %v745 = vld [vmem:[%s341] sm:$0xf]
        %v746 = vld [vmem:[%s341 + $0x4] sm:$0xf]
        %s747 = scalar_lea.vmem [#allocation8], 192
        %v748 = vld [vmem:[%s747] sm:$0xf]
        %v749 = vld [vmem:[%s747 + $0x4] sm:$0xf]
        %v750 = vld [vmem:[%s747 + $0x8] sm:$0xf]
        %v751 = vld [vmem:[%s747 + $0xc] sm:$0xf]
        %v752 = vld [vmem:[%s747 + $0x10] sm:$0xf]
        %v753 = vld [vmem:[%s747 + $0x14] sm:$0xf]
        %v754 = vld [vmem:[%s747 + $0x18] sm:$0xf]
        %v755 = vld [vmem:[%s747 + $0x1c] sm:$0xf]
        %v756 = vld [vmem:[%s747 + $0x20] sm:$0xf]
        %v757 = vld [vmem:[%s747 + $0x24] sm:$0xf]
        %v758 = vld [vmem:[%s747 + $0x28] sm:$0xf]
        %v759 = vld [vmem:[%s747 + $0x2c] sm:$0xf]
        %v760 = vld [vmem:[%s747 + $0x30] sm:$0xf]
        %v761 = vld [vmem:[%s747 + $0x34] sm:$0xf]
        %v762 = vld [vmem:[%s747 + $0x38] sm:$0xf]
        %v763 = vld [vmem:[%s747 + $0x3c] sm:$0xf]
        %v766 = vunpack.c.l.b16 %v745
        %v767 = vunpack.c.l.b16 %v746
        %v768 = vpack.c.b16 %v767, %v766
        %v786 = vunpack.c.l.b16 %v748
        %v787 = vunpack.c.l.b16 %v749
        %v788 = vunpack.c.l.b16 %v750
        %v789 = vunpack.c.l.b16 %v751
        %v790 = vunpack.c.l.b16 %v752
        %v791 = vunpack.c.l.b16 %v753
        %v792 = vunpack.c.l.b16 %v754
        %v793 = vunpack.c.l.b16 %v755
        %v794 = vunpack.c.l.b16 %v756
        %v795 = vunpack.c.l.b16 %v757
        %v796 = vunpack.c.l.b16 %v758
        %v797 = vunpack.c.l.b16 %v759
        %v798 = vunpack.c.l.b16 %v760
        %v799 = vunpack.c.l.b16 %v761
        %v800 = vunpack.c.l.b16 %v762
        %v801 = vunpack.c.l.b16 %v763
        %v802 = vpack.c.b16 %v787, %v786
        %v803 = vpack.c.b16 %v789, %v788
        %v804 = vpack.c.b16 %v791, %v790
        %v805 = vpack.c.b16 %v793, %v792
        %v806 = vpack.c.b16 %v795, %v794
        %v807 = vpack.c.b16 %v797, %v796
        %v808 = vpack.c.b16 %v799, %v798
        %v809 = vpack.c.b16 %v801, %v800
        %818 = vmatprep.subr.bf16.mxu0 0
        %819 = vmatpush1.bf16.msra.mxu0 %v802
        %820 = vmatprep.subr.bf16.mxu0 0
        %821 = vmatpush1.bf16.msra.mxu0 %v803
        %822 = vmatprep.subr.bf16.mxu0 0
        %823 = vmatpush1.bf16.msra.mxu0 %v804
        %824 = vmatprep.subr.bf16.mxu0 0
        %825 = vmatpush1.bf16.msra.mxu0 %v805
        %826 = vmatprep.subr.bf16.mxu0 0
        %827 = vmatpush1.bf16.msra.mxu0 %v806
        %828 = vmatprep.subr.bf16.mxu0 0
        %829 = vmatpush1.bf16.msra.mxu0 %v807
        %830 = vmatprep.subr.bf16.mxu0 0
        %831 = vmatpush1.bf16.msra.mxu0 %v808
        %832 = vmatprep.subr.bf16.mxu0 0
        %833 = vmatpush1.bf16.msra.mxu0 %v809
        %834 = vmatprep.subr.bf16.mxu0 0
        %835 = vmatpush1.bf16.msra.mxu0 0
        %836 = vmatprep.subr.bf16.mxu0 0
        %837 = vmatpush1.bf16.msra.mxu0 0
        %838 = vmatprep.subr.bf16.mxu0 0
        %839 = vmatpush1.bf16.msra.mxu0 0
        %840 = vmatprep.subr.bf16.mxu0 0
        %841 = vmatpush1.bf16.msra.mxu0 0
        %842 = vmatprep.subr.bf16.mxu0 0
        %843 = vmatpush1.bf16.msra.mxu0 0
        %844 = vmatprep.subr.bf16.mxu0 0
        %845 = vmatpush1.bf16.msra.mxu0 0
        %846 = vmatprep.subr.bf16.mxu0 0
        %847 = vmatpush1.bf16.msra.mxu0 0
        %848 = vmatprep.subr.bf16.mxu0 0
        %849 = vmatpush1.bf16.msra.mxu0 0
        %850 = vmatprep.mubr.bf16.mxu0 0
        %851 = vmatmul.mubr.bf16.gmra.mrb[0].mxu0 %v768
        %v852 = vpop.f32.mrb[0].mxu0
        %v853 = vadd.f32 0.0, %v852
        %v854 = vpop.f32.mrb[0].mxu0
        %v855 = vpop.f32.mrb[0].mxu0
        %v856 = vadd.f32 0.0, %v855
        %v857 = vpop.f32.mrb[0].mxu0
        %858 = vdwg.mxu0
        %v859 = vadd.f32 %v743, %v853
        %v860 = vadd.f32 %v744, %v856
        %s861 = scalar_lea.vmem %s341, 8 [#allocation5]
        %v862 = vld [vmem:[%s861] sm:$0xf]
        %v863 = vld [vmem:[%s861 + $0x4] sm:$0xf]
        %s864 = scalar_lea.vmem [#allocation8], 256
        %v865 = vld [vmem:[%s864] sm:$0xf]
        %v866 = vld [vmem:[%s864 + $0x4] sm:$0xf]
        %v867 = vld [vmem:[%s864 + $0x8] sm:$0xf]
        %v868 = vld [vmem:[%s864 + $0xc] sm:$0xf]
        %v869 = vld [vmem:[%s864 + $0x10] sm:$0xf]
        %v870 = vld [vmem:[%s864 + $0x14] sm:$0xf]
        %v871 = vld [vmem:[%s864 + $0x18] sm:$0xf]
        %v872 = vld [vmem:[%s864 + $0x1c] sm:$0xf]
        %v873 = vld [vmem:[%s864 + $0x20] sm:$0xf]
        %v874 = vld [vmem:[%s864 + $0x24] sm:$0xf]
        %v875 = vld [vmem:[%s864 + $0x28] sm:$0xf]
        %v876 = vld [vmem:[%s864 + $0x2c] sm:$0xf]
        %v877 = vld [vmem:[%s864 + $0x30] sm:$0xf]
        %v878 = vld [vmem:[%s864 + $0x34] sm:$0xf]
        %v879 = vld [vmem:[%s864 + $0x38] sm:$0xf]
        %v880 = vld [vmem:[%s864 + $0x3c] sm:$0xf]
        %v883 = vunpack.c.l.b16 %v862
        %v884 = vunpack.c.l.b16 %v863
        %v885 = vpack.c.b16 %v884, %v883
        %v903 = vunpack.c.l.b16 %v865
        %v904 = vunpack.c.l.b16 %v866
        %v905 = vunpack.c.l.b16 %v867
        %v906 = vunpack.c.l.b16 %v868
        %v907 = vunpack.c.l.b16 %v869
        %v908 = vunpack.c.l.b16 %v870
        %v909 = vunpack.c.l.b16 %v871
        %v910 = vunpack.c.l.b16 %v872
        %v911 = vunpack.c.l.b16 %v873
        %v912 = vunpack.c.l.b16 %v874
        %v913 = vunpack.c.l.b16 %v875
        %v914 = vunpack.c.l.b16 %v876
        %v915 = vunpack.c.l.b16 %v877
        %v916 = vunpack.c.l.b16 %v878
        %v917 = vunpack.c.l.b16 %v879
        %v918 = vunpack.c.l.b16 %v880
        %v919 = vpack.c.b16 %v904, %v903
        %v920 = vpack.c.b16 %v906, %v905
        %v921 = vpack.c.b16 %v908, %v907
        %v922 = vpack.c.b16 %v910, %v909
        %v923 = vpack.c.b16 %v912, %v911
        %v924 = vpack.c.b16 %v914, %v913
        %v925 = vpack.c.b16 %v916, %v915
        %v926 = vpack.c.b16 %v918, %v917
        %935 = vmatprep.subr.bf16.mxu0 0
        %936 = vmatpush1.bf16.msra.mxu0 %v919
        %937 = vmatprep.subr.bf16.mxu0 0
        %938 = vmatpush1.bf16.msra.mxu0 %v920
        %939 = vmatprep.subr.bf16.mxu0 0
        %940 = vmatpush1.bf16.msra.mxu0 %v921
        %941 = vmatprep.subr.bf16.mxu0 0
        %942 = vmatpush1.bf16.msra.mxu0 %v922
        %943 = vmatprep.subr.bf16.mxu0 0
        %944 = vmatpush1.bf16.msra.mxu0 %v923
        %945 = vmatprep.subr.bf16.mxu0 0
        %946 = vmatpush1.bf16.msra.mxu0 %v924
        %947 = vmatprep.subr.bf16.mxu0 0
        %948 = vmatpush1.bf16.msra.mxu0 %v925
        %949 = vmatprep.subr.bf16.mxu0 0
        %950 = vmatpush1.bf16.msra.mxu0 %v926
        %951 = vmatprep.subr.bf16.mxu0 0
        %952 = vmatpush1.bf16.msra.mxu0 0
        %953 = vmatprep.subr.bf16.mxu0 0
        %954 = vmatpush1.bf16.msra.mxu0 0
        %955 = vmatprep.subr.bf16.mxu0 0
        %956 = vmatpush1.bf16.msra.mxu0 0
        %957 = vmatprep.subr.bf16.mxu0 0
        %958 = vmatpush1.bf16.msra.mxu0 0
        %959 = vmatprep.subr.bf16.mxu0 0
        %960 = vmatpush1.bf16.msra.mxu0 0
        %961 = vmatprep.subr.bf16.mxu0 0
        %962 = vmatpush1.bf16.msra.mxu0 0
        %963 = vmatprep.subr.bf16.mxu0 0
        %964 = vmatpush1.bf16.msra.mxu0 0
        %965 = vmatprep.subr.bf16.mxu0 0
        %966 = vmatpush1.bf16.msra.mxu0 0
        %967 = vmatprep.mubr.bf16.mxu0 0
        %968 = vmatmul.mubr.bf16.gmra.mrb[0].mxu0 %v885
        %v969 = vpop.f32.mrb[0].mxu0
        %v970 = vadd.f32 0.0, %v969
        %v971 = vpop.f32.mrb[0].mxu0
        %v972 = vpop.f32.mrb[0].mxu0
        %v973 = vadd.f32 0.0, %v972
        %v974 = vpop.f32.mrb[0].mxu0
        %975 = vdwg.mxu0
        %v976 = vadd.f32 %v859, %v970
        %v977 = vadd.f32 %v860, %v973
        %s978 = scalar_lea.vmem %s341, 16 [#allocation5]
        %v979 = vld [vmem:[%s978] sm:$0xf]
        %v980 = vld [vmem:[%s978 + $0x4] sm:$0xf]
        %s981 = scalar_lea.vmem [#allocation8], 320
        %v982 = vld [vmem:[%s981] sm:$0xf]
        %v983 = vld [vmem:[%s981 + $0x4] sm:$0xf]
        %v984 = vld [vmem:[%s981 + $0x8] sm:$0xf]
        %v985 = vld [vmem:[%s981 + $0xc] sm:$0xf]
        %v986 = vld [vmem:[%s981 + $0x10] sm:$0xf]
        %v987 = vld [vmem:[%s981 + $0x14] sm:$0xf]
        %v988 = vld [vmem:[%s981 + $0x18] sm:$0xf]
        %v989 = vld [vmem:[%s981 + $0x1c] sm:$0xf]
        %v990 = vld [vmem:[%s981 + $0x20] sm:$0xf]
        %v991 = vld [vmem:[%s981 + $0x24] sm:$0xf]
        %v992 = vld [vmem:[%s981 + $0x28] sm:$0xf]
        %v993 = vld [vmem:[%s981 + $0x2c] sm:$0xf]
        %v994 = vld [vmem:[%s981 + $0x30] sm:$0xf]
        %v995 = vld [vmem:[%s981 + $0x34] sm:$0xf]
        %v996 = vld [vmem:[%s981 + $0x38] sm:$0xf]
        %v997 = vld [vmem:[%s981 + $0x3c] sm:$0xf]
        %v1000 = vunpack.c.l.b16 %v979
        %v1001 = vunpack.c.l.b16 %v980
        %v1002 = vpack.c.b16 %v1001, %v1000
        %v1020 = vunpack.c.l.b16 %v982
        %v1021 = vunpack.c.l.b16 %v983
        %v1022 = vunpack.c.l.b16 %v984
        %v1023 = vunpack.c.l.b16 %v985
        %v1024 = vunpack.c.l.b16 %v986
        %v1025 = vunpack.c.l.b16 %v987
        %v1026 = vunpack.c.l.b16 %v988
        %v1027 = vunpack.c.l.b16 %v989
        %v1028 = vunpack.c.l.b16 %v990
        %v1029 = vunpack.c.l.b16 %v991
        %v1030 = vunpack.c.l.b16 %v992
        %v1031 = vunpack.c.l.b16 %v993
        %v1032 = vunpack.c.l.b16 %v994
        %v1033 = vunpack.c.l.b16 %v995
        %v1034 = vunpack.c.l.b16 %v996
        %v1035 = vunpack.c.l.b16 %v997
        %v1036 = vpack.c.b16 %v1021, %v1020
        %v1037 = vpack.c.b16 %v1023, %v1022
        %v1038 = vpack.c.b16 %v1025, %v1024
        %v1039 = vpack.c.b16 %v1027, %v1026
        %v1040 = vpack.c.b16 %v1029, %v1028
        %v1041 = vpack.c.b16 %v1031, %v1030
        %v1042 = vpack.c.b16 %v1033, %v1032
        %v1043 = vpack.c.b16 %v1035, %v1034
        %1052 = vmatprep.subr.bf16.mxu0 0
        %1053 = vmatpush1.bf16.msra.mxu0 %v1036
        %1054 = vmatprep.subr.bf16.mxu0 0
        %1055 = vmatpush1.bf16.msra.mxu0 %v1037
        %1056 = vmatprep.subr.bf16.mxu0 0
        %1057 = vmatpush1.bf16.msra.mxu0 %v1038
        %1058 = vmatprep.subr.bf16.mxu0 0
        %1059 = vmatpush1.bf16.msra.mxu0 %v1039
        %1060 = vmatprep.subr.bf16.mxu0 0
        %1061 = vmatpush1.bf16.msra.mxu0 %v1040
        %1062 = vmatprep.subr.bf16.mxu0 0
        %1063 = vmatpush1.bf16.msra.mxu0 %v1041
        %1064 = vmatprep.subr.bf16.mxu0 0
        %1065 = vmatpush1.bf16.msra.mxu0 %v1042
        %1066 = vmatprep.subr.bf16.mxu0 0
        %1067 = vmatpush1.bf16.msra.mxu0 %v1043
        %1068 = vmatprep.subr.bf16.mxu0 0
        %1069 = vmatpush1.bf16.msra.mxu0 0
        %1070 = vmatprep.subr.bf16.mxu0 0
        %1071 = vmatpush1.bf16.msra.mxu0 0
        %1072 = vmatprep.subr.bf16.mxu0 0
        %1073 = vmatpush1.bf16.msra.mxu0 0
        %1074 = vmatprep.subr.bf16.mxu0 0
        %1075 = vmatpush1.bf16.msra.mxu0 0
        %1076 = vmatprep.subr.bf16.mxu0 0
        %1077 = vmatpush1.bf16.msra.mxu0 0
        %1078 = vmatprep.subr.bf16.mxu0 0
        %1079 = vmatpush1.bf16.msra.mxu0 0
        %1080 = vmatprep.subr.bf16.mxu0 0
        %1081 = vmatpush1.bf16.msra.mxu0 0
        %1082 = vmatprep.subr.bf16.mxu0 0
        %1083 = vmatpush1.bf16.msra.mxu0 0
        %1084 = vmatprep.mubr.bf16.mxu0 0
        %1085 = vmatmul.mubr.bf16.gmra.mrb[0].mxu0 %v1002
        %v1086 = vpop.f32.mrb[0].mxu0
        %v1087 = vadd.f32 0.0, %v1086
        %v1088 = vpop.f32.mrb[0].mxu0
        %v1089 = vpop.f32.mrb[0].mxu0
        %v1090 = vadd.f32 0.0, %v1089
        %v1091 = vpop.f32.mrb[0].mxu0
        %1092 = vdwg.mxu0
        %v1093 = vadd.f32 %v976, %v1087
        %v1094 = vadd.f32 %v977, %v1090
        %v1095 = vld [vmem:[%s350] sm:$0xf]
        %v1096 = vld [vmem:[%s350 + $0x4] sm:$0xf]
        %s1097 = scalar_lea.vmem [#allocation8], 384
        %v1098 = vld [vmem:[%s1097] sm:$0xf]
        %v1099 = vld [vmem:[%s1097 + $0x4] sm:$0xf]
        %v1100 = vld [vmem:[%s1097 + $0x8] sm:$0xf]
        %v1101 = vld [vmem:[%s1097 + $0xc] sm:$0xf]
        %v1102 = vld [vmem:[%s1097 + $0x10] sm:$0xf]
        %v1103 = vld [vmem:[%s1097 + $0x14] sm:$0xf]
        %v1104 = vld [vmem:[%s1097 + $0x18] sm:$0xf]
        %v1105 = vld [vmem:[%s1097 + $0x1c] sm:$0xf]
        %v1106 = vld [vmem:[%s1097 + $0x20] sm:$0xf]
        %v1107 = vld [vmem:[%s1097 + $0x24] sm:$0xf]
        %v1108 = vld [vmem:[%s1097 + $0x28] sm:$0xf]
        %v1109 = vld [vmem:[%s1097 + $0x2c] sm:$0xf]
        %v1110 = vld [vmem:[%s1097 + $0x30] sm:$0xf]
        %v1111 = vld [vmem:[%s1097 + $0x34] sm:$0xf]
        %v1112 = vld [vmem:[%s1097 + $0x38] sm:$0xf]
        %v1113 = vld [vmem:[%s1097 + $0x3c] sm:$0xf]
        %v1116 = vunpack.c.l.b16 %v1095
        %v1117 = vunpack.c.l.b16 %v1096
        %v1118 = vpack.c.b16 %v1117, %v1116
        %v1136 = vunpack.c.l.b16 %v1098
        %v1137 = vunpack.c.l.b16 %v1099
        %v1138 = vunpack.c.l.b16 %v1100
        %v1139 = vunpack.c.l.b16 %v1101
        %v1140 = vunpack.c.l.b16 %v1102
        %v1141 = vunpack.c.l.b16 %v1103
        %v1142 = vunpack.c.l.b16 %v1104
        %v1143 = vunpack.c.l.b16 %v1105
        %v1144 = vunpack.c.l.b16 %v1106
        %v1145 = vunpack.c.l.b16 %v1107
        %v1146 = vunpack.c.l.b16 %v1108
        %v1147 = vunpack.c.l.b16 %v1109
        %v1148 = vunpack.c.l.b16 %v1110
        %v1149 = vunpack.c.l.b16 %v1111
        %v1150 = vunpack.c.l.b16 %v1112
        %v1151 = vunpack.c.l.b16 %v1113
        %v1152 = vpack.c.b16 %v1137, %v1136
        %v1153 = vpack.c.b16 %v1139, %v1138
        %v1154 = vpack.c.b16 %v1141, %v1140
        %v1155 = vpack.c.b16 %v1143, %v1142
        %v1156 = vpack.c.b16 %v1145, %v1144
        %v1157 = vpack.c.b16 %v1147, %v1146
        %v1158 = vpack.c.b16 %v1149, %v1148
        %v1159 = vpack.c.b16 %v1151, %v1150
        %1168 = vmatprep.subr.bf16.mxu0 0
        %1169 = vmatpush1.bf16.msra.mxu0 %v1152
        %1170 = vmatprep.subr.bf16.mxu0 0
        %1171 = vmatpush1.bf16.msra.mxu0 %v1153
        %1172 = vmatprep.subr.bf16.mxu0 0
        %1173 = vmatpush1.bf16.msra.mxu0 %v1154
        %1174 = vmatprep.subr.bf16.mxu0 0
        %1175 = vmatpush1.bf16.msra.mxu0 %v1155
        %1176 = vmatprep.subr.bf16.mxu0 0
        %1177 = vmatpush1.bf16.msra.mxu0 %v1156
        %1178 = vmatprep.subr.bf16.mxu0 0
        %1179 = vmatpush1.bf16.msra.mxu0 %v1157
        %1180 = vmatprep.subr.bf16.mxu0 0
        %1181 = vmatpush1.bf16.msra.mxu0 %v1158
        %1182 = vmatprep.subr.bf16.mxu0 0
        %1183 = vmatpush1.bf16.msra.mxu0 %v1159
        %1184 = vmatprep.subr.bf16.mxu0 0
        %1185 = vmatpush1.bf16.msra.mxu0 0
        %1186 = vmatprep.subr.bf16.mxu0 0
        %1187 = vmatpush1.bf16.msra.mxu0 0
        %1188 = vmatprep.subr.bf16.mxu0 0
        %1189 = vmatpush1.bf16.msra.mxu0 0
        %1190 = vmatprep.subr.bf16.mxu0 0
        %1191 = vmatpush1.bf16.msra.mxu0 0
        %1192 = vmatprep.subr.bf16.mxu0 0
        %1193 = vmatpush1.bf16.msra.mxu0 0
        %1194 = vmatprep.subr.bf16.mxu0 0
        %1195 = vmatpush1.bf16.msra.mxu0 0
        %1196 = vmatprep.subr.bf16.mxu0 0
        %1197 = vmatpush1.bf16.msra.mxu0 0
        %1198 = vmatprep.subr.bf16.mxu0 0
        %1199 = vmatpush1.bf16.msra.mxu0 0
        %1200 = vmatprep.mubr.bf16.mxu0 0
        %1201 = vmatmul.mubr.bf16.gmra.mrb[0].mxu0 %v1118
        %v1202 = vpop.f32.mrb[0].mxu0
        %v1203 = vadd.f32 0.0, %v1202
        %v1204 = vpop.f32.mrb[0].mxu0
        %v1205 = vpop.f32.mrb[0].mxu0
        %v1206 = vadd.f32 0.0, %v1205
        %v1207 = vpop.f32.mrb[0].mxu0
        %1208 = vdwg.mxu0
        %v1209 = vadd.f32 %v1093, %v1203
        %v1210 = vadd.f32 %v1094, %v1206
        %s1211 = scalar_lea.vmem %s350, 8 [#allocation7]
        %v1212 = vld [vmem:[%s1211] sm:$0xf]
        %v1213 = vld [vmem:[%s1211 + $0x4] sm:$0xf]
        %s1214 = scalar_lea.vmem [#allocation8], 448
        %v1215 = vld [vmem:[%s1214] sm:$0xf]
        %v1216 = vld [vmem:[%s1214 + $0x4] sm:$0xf]
        %v1217 = vld [vmem:[%s1214 + $0x8] sm:$0xf]
        %v1218 = vld [vmem:[%s1214 + $0xc] sm:$0xf]
        %v1219 = vld [vmem:[%s1214 + $0x10] sm:$0xf]
        %v1220 = vld [vmem:[%s1214 + $0x14] sm:$0xf]
        %v1221 = vld [vmem:[%s1214 + $0x18] sm:$0xf]
        %v1222 = vld [vmem:[%s1214 + $0x1c] sm:$0xf]
        %v1223 = vld [vmem:[%s1214 + $0x20] sm:$0xf]
        %v1224 = vld [vmem:[%s1214 + $0x24] sm:$0xf]
        %v1225 = vld [vmem:[%s1214 + $0x28] sm:$0xf]
        %v1226 = vld [vmem:[%s1214 + $0x2c] sm:$0xf]
        %v1227 = vld [vmem:[%s1214 + $0x30] sm:$0xf]
        %v1228 = vld [vmem:[%s1214 + $0x34] sm:$0xf]
        %v1229 = vld [vmem:[%s1214 + $0x38] sm:$0xf]
        %v1230 = vld [vmem:[%s1214 + $0x3c] sm:$0xf]
        %v1233 = vunpack.c.l.b16 %v1212
        %v1234 = vunpack.c.l.b16 %v1213
        %v1235 = vpack.c.b16 %v1234, %v1233
        %v1253 = vunpack.c.l.b16 %v1215
        %v1254 = vunpack.c.l.b16 %v1216
        %v1255 = vunpack.c.l.b16 %v1217
        %v1256 = vunpack.c.l.b16 %v1218
        %v1257 = vunpack.c.l.b16 %v1219
        %v1258 = vunpack.c.l.b16 %v1220
        %v1259 = vunpack.c.l.b16 %v1221
        %v1260 = vunpack.c.l.b16 %v1222
        %v1261 = vunpack.c.l.b16 %v1223
        %v1262 = vunpack.c.l.b16 %v1224
        %v1263 = vunpack.c.l.b16 %v1225
        %v1264 = vunpack.c.l.b16 %v1226
        %v1265 = vunpack.c.l.b16 %v1227
        %v1266 = vunpack.c.l.b16 %v1228
        %v1267 = vunpack.c.l.b16 %v1229
        %v1268 = vunpack.c.l.b16 %v1230
        %v1269 = vpack.c.b16 %v1254, %v1253
        %v1270 = vpack.c.b16 %v1256, %v1255
        %v1271 = vpack.c.b16 %v1258, %v1257
        %v1272 = vpack.c.b16 %v1260, %v1259
        %v1273 = vpack.c.b16 %v1262, %v1261
        %v1274 = vpack.c.b16 %v1264, %v1263
        %v1275 = vpack.c.b16 %v1266, %v1265
        %v1276 = vpack.c.b16 %v1268, %v1267
        %1285 = vmatprep.subr.bf16.mxu0 0
        %1286 = vmatpush1.bf16.msra.mxu0 %v1269
        %1287 = vmatprep.subr.bf16.mxu0 0
        %1288 = vmatpush1.bf16.msra.mxu0 %v1270
        %1289 = vmatprep.subr.bf16.mxu0 0
        %1290 = vmatpush1.bf16.msra.mxu0 %v1271
        %1291 = vmatprep.subr.bf16.mxu0 0
        %1292 = vmatpush1.bf16.msra.mxu0 %v1272
        %1293 = vmatprep.subr.bf16.mxu0 0
        %1294 = vmatpush1.bf16.msra.mxu0 %v1273
        %1295 = vmatprep.subr.bf16.mxu0 0
        %1296 = vmatpush1.bf16.msra.mxu0 %v1274
        %1297 = vmatprep.subr.bf16.mxu0 0
        %1298 = vmatpush1.bf16.msra.mxu0 %v1275
        %1299 = vmatprep.subr.bf16.mxu0 0
        %1300 = vmatpush1.bf16.msra.mxu0 %v1276
        %1301 = vmatprep.subr.bf16.mxu0 0
        %1302 = vmatpush1.bf16.msra.mxu0 0
        %1303 = vmatprep.subr.bf16.mxu0 0
        %1304 = vmatpush1.bf16.msra.mxu0 0
        %1305 = vmatprep.subr.bf16.mxu0 0
        %1306 = vmatpush1.bf16.msra.mxu0 0
        %1307 = vmatprep.subr.bf16.mxu0 0
        %1308 = vmatpush1.bf16.msra.mxu0 0
        %1309 = vmatprep.subr.bf16.mxu0 0
        %1310 = vmatpush1.bf16.msra.mxu0 0
        %1311 = vmatprep.subr.bf16.mxu0 0
        %1312 = vmatpush1.bf16.msra.mxu0 0
        %1313 = vmatprep.subr.bf16.mxu0 0
        %1314 = vmatpush1.bf16.msra.mxu0 0
        %1315 = vmatprep.subr.bf16.mxu0 0
        %1316 = vmatpush1.bf16.msra.mxu0 0
        %1317 = vmatprep.mubr.bf16.mxu0 0
        %1318 = vmatmul.mubr.bf16.gmra.mrb[0].mxu0 %v1235
        %v1319 = vpop.f32.mrb[0].mxu0
        %v1320 = vadd.f32 0.0, %v1319
        %v1321 = vpop.f32.mrb[0].mxu0
        %v1322 = vpop.f32.mrb[0].mxu0
        %v1323 = vadd.f32 0.0, %v1322
        %v1324 = vpop.f32.mrb[0].mxu0
        %1325 = vdwg.mxu0
        %v1326 = vadd.f32 %v1209, %v1320
        %v1327 = vadd.f32 %v1210, %v1323
        %s1328 = scalar_lea.vmem %s350, 16 [#allocation7]
        %v1329 = vld [vmem:[%s1328] sm:$0xf]
        %v1330 = vld [vmem:[%s1328 + $0x4] sm:$0xf]
        %s1331 = scalar_lea.vmem [#allocation8], 512
        %v1332 = vld [vmem:[%s1331] sm:$0xf]
        %v1333 = vld [vmem:[%s1331 + $0x4] sm:$0xf]
        %v1334 = vld [vmem:[%s1331 + $0x8] sm:$0xf]
        %v1335 = vld [vmem:[%s1331 + $0xc] sm:$0xf]
        %v1336 = vld [vmem:[%s1331 + $0x10] sm:$0xf]
        %v1337 = vld [vmem:[%s1331 + $0x14] sm:$0xf]
        %v1338 = vld [vmem:[%s1331 + $0x18] sm:$0xf]
        %v1339 = vld [vmem:[%s1331 + $0x1c] sm:$0xf]
        %v1340 = vld [vmem:[%s1331 + $0x20] sm:$0xf]
        %v1341 = vld [vmem:[%s1331 + $0x24] sm:$0xf]
        %v1342 = vld [vmem:[%s1331 + $0x28] sm:$0xf]
        %v1343 = vld [vmem:[%s1331 + $0x2c] sm:$0xf]
        %v1344 = vld [vmem:[%s1331 + $0x30] sm:$0xf]
        %v1345 = vld [vmem:[%s1331 + $0x34] sm:$0xf]
        %v1346 = vld [vmem:[%s1331 + $0x38] sm:$0xf]
        %v1347 = vld [vmem:[%s1331 + $0x3c] sm:$0xf]
        %v1350 = vunpack.c.l.b16 %v1329
        %v1351 = vunpack.c.l.b16 %v1330
        %v1352 = vpack.c.b16 %v1351, %v1350
        %v1370 = vunpack.c.l.b16 %v1332
        %v1371 = vunpack.c.l.b16 %v1333
        %v1372 = vunpack.c.l.b16 %v1334
        %v1373 = vunpack.c.l.b16 %v1335
        %v1374 = vunpack.c.l.b16 %v1336
        %v1375 = vunpack.c.l.b16 %v1337
        %v1376 = vunpack.c.l.b16 %v1338
        %v1377 = vunpack.c.l.b16 %v1339
        %v1378 = vunpack.c.l.b16 %v1340
        %v1379 = vunpack.c.l.b16 %v1341
        %v1380 = vunpack.c.l.b16 %v1342
        %v1381 = vunpack.c.l.b16 %v1343
        %v1382 = vunpack.c.l.b16 %v1344
        %v1383 = vunpack.c.l.b16 %v1345
        %v1384 = vunpack.c.l.b16 %v1346
        %v1385 = vunpack.c.l.b16 %v1347
        %v1386 = vpack.c.b16 %v1371, %v1370
        %v1387 = vpack.c.b16 %v1373, %v1372
        %v1388 = vpack.c.b16 %v1375, %v1374
        %v1389 = vpack.c.b16 %v1377, %v1376
        %v1390 = vpack.c.b16 %v1379, %v1378
        %v1391 = vpack.c.b16 %v1381, %v1380
        %v1392 = vpack.c.b16 %v1383, %v1382
        %v1393 = vpack.c.b16 %v1385, %v1384
        %1402 = vmatprep.subr.bf16.mxu0 0
        %1403 = vmatpush1.bf16.msra.mxu0 %v1386
        %1404 = vmatprep.subr.bf16.mxu0 0
        %1405 = vmatpush1.bf16.msra.mxu0 %v1387
        %1406 = vmatprep.subr.bf16.mxu0 0
        %1407 = vmatpush1.bf16.msra.mxu0 %v1388
        %1408 = vmatprep.subr.bf16.mxu0 0
        %1409 = vmatpush1.bf16.msra.mxu0 %v1389
        %1410 = vmatprep.subr.bf16.mxu0 0
        %1411 = vmatpush1.bf16.msra.mxu0 %v1390
        %1412 = vmatprep.subr.bf16.mxu0 0
        %1413 = vmatpush1.bf16.msra.mxu0 %v1391
        %1414 = vmatprep.subr.bf16.mxu0 0
        %1415 = vmatpush1.bf16.msra.mxu0 %v1392
        %1416 = vmatprep.subr.bf16.mxu0 0
        %1417 = vmatpush1.bf16.msra.mxu0 %v1393
        %1418 = vmatprep.subr.bf16.mxu0 0
        %1419 = vmatpush1.bf16.msra.mxu0 0
        %1420 = vmatprep.subr.bf16.mxu0 0
        %1421 = vmatpush1.bf16.msra.mxu0 0
        %1422 = vmatprep.subr.bf16.mxu0 0
        %1423 = vmatpush1.bf16.msra.mxu0 0
        %1424 = vmatprep.subr.bf16.mxu0 0
        %1425 = vmatpush1.bf16.msra.mxu0 0
        %1426 = vmatprep.subr.bf16.mxu0 0
        %1427 = vmatpush1.bf16.msra.mxu0 0
        %1428 = vmatprep.subr.bf16.mxu0 0
        %1429 = vmatpush1.bf16.msra.mxu0 0
        %1430 = vmatprep.subr.bf16.mxu0 0
        %1431 = vmatpush1.bf16.msra.mxu0 0
        %1432 = vmatprep.subr.bf16.mxu0 0
        %1433 = vmatpush1.bf16.msra.mxu0 0
        %1434 = vmatprep.mubr.bf16.mxu0 0
        %1435 = vmatmul.mubr.bf16.gmra.mrb[0].mxu0 %v1352
        %v1436 = vpop.f32.mrb[0].mxu0
        %v1437 = vadd.f32 0.0, %v1436
        %v1438 = vpop.f32.mrb[0].mxu0
        %v1439 = vpop.f32.mrb[0].mxu0
        %v1440 = vadd.f32 0.0, %v1439
        %v1441 = vpop.f32.mrb[0].mxu0
        %1442 = vdwg.mxu0
        %v1443 = vadd.f32 %v1326, %v1437
        %v1444 = vadd.f32 %v1327, %v1440
        %v1445 = vld [vmem:[%s398] sm:$0x1]
        %v1447 = vlaneseq
        %v1448 = vshrl.u32 %v1447, 7
        %v1449 = vsub.s32 0, %v1448
        %v1450 = vrot.slane %v1445, %v1449
        %v1452 = vadd.f32 %v1443, %v1450
        %v1453 = vadd.f32 %v1444, %v1450
        %v1454 = vmax.f32 %v1452, 0.0
        %v1455 = vmax.f32 %v1453, 0.0
        %1456 = vst [vmem:[%s393] sm:$0xff] %v1454
        %1457 = vst [vmem:[%s393 + $0x8] sm:$0xff] %v1455
        %s1458 = sand.u32 %s197, 1
        %s1459 = scalar_lea.sflag [#allocation4], %s1458
        %s1460 = sand.u32 %s197, 1
        %s1461 = smul.addr %s1460, 16
        %s1462 = scalar_lea.vmem [#allocation10], %s1461
        // Predicated region
        $region57: #{tpu_custom_call.1} parent=39 // pred_check
          %p1463 = pneg %p207
        $region58: #{tpu_custom_call.1} parent=39 // pred_check_branch
          %1465 = sbr.rel (%p1463) target = $region60
        $region59: #{tpu_custom_call.1} parent=39 // pred_region
          %s1467 = ssub.s32 256, 256
          %1468 = vsyncadd %s1459, %s1467
          %s1469 = smul.addr %s33, 2
          %s1470 = sadd.s32 %s31, %s1469
          %s1471 = smul.addr %s32, 32
          %s1472 = sadd.s32 %s1470, %s1471
          %s1473 = smul.addr %s1472, 128
          %s1474 = scalar_lea.hbm %s5, %s1473
          %s1475 = sshll.u32 %s1462, 4
          %s1476 = int_to_ptr.vmem [resolvable:$true] %s1475
          %1481 = dma.vmem_to_hbm [thread:$0]  %s1476, 256, %s1474, %s1459, 128, 128, 8
        $region60: #{tpu_custom_call.1} parent=39 // pred_fallthru
          _
      $region40: #{tpu_custom_call.1} parent=5 // pred_fallthru
        _
      %p1482 = scmp.le.s32.totalorder 2, %s21
      // Predicated region
      $region61: #{tpu_custom_call.1} parent=5 // pred_check
        %p1483 = pneg %p1482
      $region62: #{tpu_custom_call.1} parent=5 // pred_check_branch
        %1485 = sbr.rel (%p1483) target = $region64
      $region63: #{tpu_custom_call.1} parent=5 // pred_region
        %s1486 = ssub.s32 %s21, 2
        // Predicated region
        $region65: #{tpu_custom_call.1} parent=63 // pred_check
          %p1487 = pneg %p213
        $region66: #{tpu_custom_call.1} parent=63 // pred_check_branch
          %1489 = sbr.rel (%p1487) target = $region68
        $region67: #{tpu_custom_call.1} parent=63 // pred_region
          %s1490 = sand.u32 %s198, 1
          %s1491 = scalar_lea.sflag [#allocation4], %s1490
          %s1492 = sand.u32 %s198, 1
          %s1493 = smul.addr %s1492, 16
          %s1494 = scalar_lea.vmem [#allocation10], %s1493
          %1495 = dma.done %s1491, 256
        $region68: #{tpu_custom_call.1} parent=63 // pred_fallthru
          _
      $region64: #{tpu_custom_call.1} parent=5 // pred_fallthru
        _
    $region6: #{tpu_custom_call.1} parent=1 // loop_footer
      %s25 = sadd.s32 1, %s21
    $region7: #{tpu_custom_call.1} parent=1 // loop_footer_branch
      %20 = sbr.rel target = $region3
    $region8: #{tpu_custom_call.1} parent=1 // loop_exit
      _
    %1496 = vsyncpa [#allocation3], 1
    %s1497 = scalar_lea.sflag [#allocation3], 1
    %1498 = vsyncpa %s1497, 1
    %1499 = vsyncpa [#allocation6], 1
    %s1500 = scalar_lea.sflag [#allocation6], 1
    %1501 = vsyncpa %s1500, 1
    %1502 = vsyncpa [#allocation9], 1
    %1503 = vsyncpa [#allocation4], 1
    %s1504 = scalar_lea.sflag [#allocation4], 1
    %1505 = vsyncpa %s1504, 1

</llo_original>
